<compile_context>
chip_gen: v5e
topology: v5e:2x2
jax: 0.10.0
libtpu: 0.0.40
codegen_flags: <defaults>
</compile_context>

<pallas_src>
import functools

import jax
import jax.numpy as jnp
from jax import lax
from jax.experimental import pallas as pl
from jax.experimental.pallas import tpu as pltpu

# Packed output-slab row layout (24 rows, sublane-aligned).
_ROW_LABELS = 0        # rows 0:7  -> [pro, alp, ads0..ads4] (truncated, clamped >= 0)
_ROW_BBOX = 7          # rows 7:11 -> target bbox xyxy
_ROW_CORN = 11         # rows 11:19 -> target corners
_ROW_FG = 19           # row 19    -> fg count (float)
_ROW_NORM = 20         # row 20    -> norm_align_metric
_NUM_OUT_ROWS = 24     # rows 21:24 are padding (multiple of 8 sublanes)

# Packed gt-slab column layout (24 columns): mirrors the output row layout so the
# fused one-hot gather matmul produces the output slab directly.
_COL_MASK_GT = 19      # cols 0:19 = [pro, alp, ads*5, bbox*4, corners*8], 19 mask_gt, 20:24 zeros
_NUM_GT_COLS = 24


def _int_pow(x, p):
    """x ** p via repeated multiplication for non-negative integral p (else jnp.power)."""
    ip = int(p)
    if float(ip) == float(p) and ip >= 1:
        result = None
        base = x
        n = ip
        while n > 0:
            if n & 1:
                result = base if result is None else result * base
            n >>= 1
            if n:
                base = base * base
        return result
    if float(p) == 0.0:
        return jnp.ones_like(x)
    return jnp.power(x, p)


def _tal_kernel(
    # ---- inputs (per batch) ----
    pd_sc_t_ref,   # (npro, A) f32  class scores, anchors on lanes
    pd_bb_t_ref,   # (4, A)    f32  pred boxes xyxy, anchors on lanes
    anc_t_ref,     # (2, A)    f32  anchor centers, anchors on lanes
    gt_pk_ref,     # (N, 24)   f32  [pro, alp, ads*5, bbox*4, corners*8, mask_gt, 0*4]
    # ---- output (per batch) ----
    out_ref,       # (24, A)   f32  packed slab (see _ROW_* layout)
    *, topk, npro, alpha, beta, eps,
):
    f32 = jnp.float32
    N = gt_pk_ref.shape[0]
    A = pd_sc_t_ref.shape[1]
    R = out_ref.shape[0]

    pd_sc_t = pd_sc_t_ref[...]                       # (npro, A)
    pd_bb_t = pd_bb_t_ref[...]                       # (4, A)
    anc_t = anc_t_ref[...]                           # (2, A)
    gt_pk = gt_pk_ref[...]                           # (N, 24)

    gt_bb = gt_pk[:, _ROW_BBOX:_ROW_BBOX + 4]        # (N, 4)
    mask_gt = gt_pk[:, _COL_MASK_GT:_COL_MASK_GT + 1]  # (N, 1)
    # .long() in torch truncates toward zero; f32->i32 cast does the same.
    gt_pro_i = gt_pk[:, 0:1].astype(jnp.int32)       # (N, 1)

    # ---------------- get_box_metrics ----------------
    # bbox_scores[n, a] = pd_scores[a, gt_pro[n]] via one-hot matmul (K=npro).
    cls_iota = lax.broadcasted_iota(jnp.int32, (N, npro), 1)
    onehot_cls = (cls_iota == gt_pro_i).astype(f32)                     # (N, npro)
    bbox_scores = lax.dot_general(
        onehot_cls, pd_sc_t,
        dimension_numbers=(((1,), (0,)), ((), ())),
        preferred_element_type=f32)                                     # (N, A)

    # IoU(gt, pd), xyxy boxes.
    gx1, gy1, gx2, gy2 = (gt_bb[:, 0:1], gt_bb[:, 1:2],
                          gt_bb[:, 2:3], gt_bb[:, 3:4])                 # (N, 1)
    px1, py1, px2, py2 = (pd_bb_t[0:1, :], pd_bb_t[1:2, :],
                          pd_bb_t[2:3, :], pd_bb_t[3:4, :])             # (1, A)
    iw = jnp.maximum(jnp.minimum(gx2, px2) - jnp.maximum(gx1, px1), 0.0)
    ih = jnp.maximum(jnp.minimum(gy2, py2) - jnp.maximum(gy1, py1), 0.0)
    overlap = iw * ih                                                   # (N, A)
    area_gt = jnp.maximum(gx2 - gx1, 0.0) * jnp.maximum(gy2 - gy1, 0.0)  # (N, 1)
    area_pd = jnp.maximum(px2 - px1, 0.0) * jnp.maximum(py2 - py1, 0.0)  # (1, A)
    overlaps = overlap / (area_gt + area_pd - overlap + 1e-9)           # (N, A)

    am_cls = bbox_scores if alpha == 1.0 else _int_pow(bbox_scores, alpha)
    am_iou = overlaps if beta == 1.0 else _int_pow(overlaps, beta)
    align_metric = am_cls * am_iou                                      # (N, A)

    # ---------------- select_candidates_in_gts ----------------
    ax, ay = anc_t[0:1, :], anc_t[1:2, :]                               # (1, A)
    deltas_min = jnp.minimum(jnp.minimum(ax - gx1, ay - gy1),
                             jnp.minimum(gx2 - ax, gy2 - ay))           # (N, A)
    mask_in_gts = (deltas_min > 1e-9).astype(f32)

    # ---------------- select_topk_candidates ----------------
    # Deterministic top-k over anchors: unrolled (max -> first-index -> mask) steps.
    # TODO(synk): a single-reduction argmax per step (perf review item) needs
    #             lax.argmax lowering in Mosaic; keep the proven two-reduce pattern.
    work = align_metric * mask_in_gts                                   # (N, A)
    a_iota = lax.broadcasted_iota(jnp.int32, (N, A), 1)
    membership = jnp.zeros((N, A), f32)
    NEG = jnp.float32(-1e30)
    for _ in range(topk):
        vmax = jnp.max(work, axis=-1, keepdims=True)                    # (N, 1)
        first = jnp.min(jnp.where(work == vmax, a_iota, A),
                        axis=-1, keepdims=True)                         # (N, 1)
        sel = a_iota == first
        membership = membership + sel.astype(f32)
        work = jnp.where(sel, NEG, work)
    # topk_mask is mask_gt in the reference (passed explicitly by get_pos_mask).
    mask_pos = membership * mask_gt * mask_in_gts                       # (N, A)

    # ---------------- select_highest_overlaps ----------------
    n_iota = lax.broadcasted_iota(jnp.int32, (N, A), 0)
    fg_pre = jnp.sum(mask_pos, axis=0, keepdims=True)                   # (1, A)
    ov_max = jnp.max(overlaps, axis=0, keepdims=True)
    max_ov_idx = jnp.min(jnp.where(overlaps == ov_max, n_iota, N),
                         axis=0, keepdims=True)                         # (1, A)
    mask_pos = jnp.where(fg_pre > 1.0, (n_iota == max_ov_idx).astype(f32), mask_pos)
    fg_row = jnp.sum(mask_pos, axis=0, keepdims=True)                   # (1, A) final
    mp_max = jnp.max(mask_pos, axis=0, keepdims=True)
    target_gt_idx = jnp.min(jnp.where(mask_pos == mp_max, n_iota, N),
                            axis=0, keepdims=True)                      # (1, A)

    # ---------------- get_targets: ONE fused one-hot gather matmul ----------------
    tgi_onehot = (n_iota == target_gt_idx).astype(f32)                  # (N, A)
    gathered = lax.dot_general(gt_pk, tgi_onehot,
                               dimension_numbers=(((0,), (0,)), ((), ())),
                               preferred_element_type=f32)              # (24, A)

    # ---------------- normalization of align metric ----------------
    am = align_metric * mask_pos                                        # (N, A)
    pos_align = jnp.max(am, axis=-1, keepdims=True)                     # (N, 1)
    pos_ov = jnp.max(overlaps * mask_pos, axis=-1, keepdims=True)       # (N, 1)
    norm_row = jnp.max(am * pos_ov / (pos_align + eps),
                       axis=0, keepdims=True)                           # (1, A)

    # ---------------- pack and store (single full-block, lane-dense store) ------
    row_iota = lax.broadcasted_iota(jnp.int32, (R, 1), 0)
    # Label rows: .long() truncation + clamp-at-0 (matches torch). Applied to all
    # rows for layout simplicity; only rows [0:7) are kept by the select below.
    lab_all = jnp.maximum(gathered.astype(jnp.int32), 0).astype(f32)    # (24, A)
    packed = jnp.where(row_iota < _ROW_BBOX, lab_all, gathered)         # labels vs raw
    packed = jnp.where(row_iota == _ROW_FG, fg_row, packed)
    packed = jnp.where(row_iota == _ROW_NORM, norm_row, packed)
    out_ref[...] = packed


def _squeeze_batch_spec(shape):
    nrest = len(shape) - 1
    return pl.BlockSpec((None,) + tuple(shape[1:]),
                        lambda b, _n=nrest: (b,) + (0,) * _n)


class TaskAlignedAssigner:
    def __init__(self, topk=13, npro=31, nalp=24, nads=37, alpha=1.0, beta=6.0, eps=1e-9):
        self.topk = topk
        self.npro = npro
        self.nalp = nalp
        self.nads = nads
        self.pro_bg_idx = npro
        self.alp_bg_idx = nalp
        self.ads_bg_idx = nads
        self.alpha = alpha
        self.beta = beta
        self.eps = eps

    def __call__(self, pd_pro_scores, pd_alp_scores, pd_ads_scores, pd_bboxes,
                 pd_corners, anc_points, gt_pro, gt_alp, gt_ads, gt_bboxes,
                 gt_corners, mask_gt):
        bs, A, npro = pd_pro_scores.shape
        n_max = gt_bboxes.shape[1]

        if n_max == 0:
            target_ads = [jnp.full((bs, A), self.ads_bg_idx, jnp.int32) for _ in range(5)]
            target_ad0_4 = [jnp.zeros((bs, A, self.nads), jnp.float32) for _ in range(5)]
            return (jnp.full((bs, A), self.pro_bg_idx, jnp.int32),
                    jnp.full((bs, A), self.alp_bg_idx, jnp.int32),
                    target_ads,
                    jnp.zeros((bs, A, 4), jnp.float32),
                    jnp.zeros((bs, A, 8), jnp.float32),
                    jnp.zeros((bs, A, self.npro), jnp.float32),
                    jnp.zeros((bs, A, self.nalp), jnp.float32),
                    target_ad0_4,
                    jnp.zeros((bs, A), jnp.float32))

        f32 = jnp.float32
        # Wrapper-side layout plumbing: anchors become the minor (lane) dim.
        # TODO(synk): if the producer can emit anchors-minor layouts directly, these
        #             input transposes (an extra HBM pass each) disappear.
        pd_sc_t = jnp.transpose(pd_pro_scores.astype(f32), (0, 2, 1))   # (bs, npro, A)
        pd_bb_t = jnp.transpose(pd_bboxes.astype(f32), (0, 2, 1))       # (bs, 4, A)
        anc_t = jnp.transpose(anc_points.astype(f32))                    # (2, A)
        gt_pad = jnp.zeros((bs, n_max, _NUM_GT_COLS - _COL_MASK_GT - 1), f32)
        gt_pk = jnp.concatenate(
            [gt_pro, gt_alp, gt_ads, gt_bboxes, gt_corners, mask_gt, gt_pad],
            axis=-1).astype(f32)                                         # (bs, N, 24)

        kern = functools.partial(
            _tal_kernel, topk=self.topk, npro=self.npro,
            alpha=self.alpha, beta=self.beta, eps=self.eps)

        out_shape = jax.ShapeDtypeStruct((bs, _NUM_OUT_ROWS, A), f32)
        in_specs = [
            _squeeze_batch_spec(pd_sc_t.shape),
            _squeeze_batch_spec(pd_bb_t.shape),
            pl.BlockSpec(anc_t.shape, lambda b: (0, 0)),
            _squeeze_batch_spec(gt_pk.shape),
        ]
        out_spec = _squeeze_batch_spec(out_shape.shape)

        out_f = pl.pallas_call(
            kern,
            out_shape=out_shape,
            grid=(bs,),
            in_specs=in_specs,
            out_specs=out_spec,
            compiler_params=pltpu.CompilerParams(
                dimension_semantics=("parallel",),
                vmem_limit_bytes=32 * 1024 * 1024),
        )(pd_sc_t, pd_bb_t, anc_t, gt_pk)

        # ---- unpack compact slab; rebuild one-hot scores directly in (bs, A, C) ----
        target_pro = out_f[:, _ROW_LABELS + 0, :].astype(jnp.int32)      # (bs, A)
        target_alp = out_f[:, _ROW_LABELS + 1, :].astype(jnp.int32)
        target_ad0_4 = [out_f[:, _ROW_LABELS + 2 + i, :].astype(jnp.int32)
                        for i in range(5)]
        target_bboxes = jnp.transpose(out_f[:, _ROW_BBOX:_ROW_BBOX + 4, :], (0, 2, 1))
        target_corners = jnp.transpose(out_f[:, _ROW_CORN:_ROW_CORN + 8, :], (0, 2, 1))
        fg_mask = out_f[:, _ROW_FG, :] > 0                                # (bs, A) bool
        norm = out_f[:, _ROW_NORM, :]                                     # (bs, A) f32

        fg3 = fg_mask[..., None]
        pro_iota = jnp.arange(self.npro, dtype=jnp.int32)
        target_pro_scores = jnp.where(
            (target_pro[..., None] == pro_iota) & fg3,
            norm[..., None], jnp.float32(0.0))                            # (bs, A, npro)
        alp_iota = jnp.arange(self.nalp, dtype=jnp.int32)
        target_alp_scores = ((target_alp[..., None] == alp_iota)
                             & fg3).astype(jnp.int32)                     # (bs, A, nalp)
        ads_iota = jnp.arange(self.nads, dtype=jnp.int32)
        target_ad0_4_scores = [
            ((target_ad0_4[i][..., None] == ads_iota) & fg3).astype(jnp.int32)
            for i in range(5)]                                            # 5 x (bs, A, nads)

        return (target_pro, target_alp, target_ad0_4, target_bboxes, target_corners,
                target_pro_scores, target_alp_scores, target_ad0_4_scores, fg_mask)


if __name__ == "__main__":
    key = jax.random.PRNGKey(0)
    bs, N = 2, 8
    H = W = 16
    stride = 8.0
    A = H * W  # 256 anchors

    assigner = TaskAlignedAssigner()
    npro, nalp, nads = assigner.npro, assigner.nalp, assigner.nads

    ks = jax.random.split(key, 16)

    xs = (jnp.arange(W, dtype=jnp.float32) + 0.5) * stride
    ys = (jnp.arange(H, dtype=jnp.float32) + 0.5) * stride
    gx, gy = jnp.meshgrid(xs, ys, indexing="xy")
    anc_points = jnp.stack([gx.reshape(-1), gy.reshape(-1)], axis=-1)       # (A, 2)

    pd_pro_scores = jax.nn.sigmoid(jax.random.normal(ks[0], (bs, A, npro)))
    pd_alp_scores = jax.nn.sigmoid(jax.random.normal(ks[1], (bs, A, nalp)))
    pd_ads_scores = [jax.nn.sigmoid(jax.random.normal(ks[2 + i], (bs, A, nads)))
                     for i in range(5)]

    wh = 4.0 + 20.0 * jax.random.uniform(ks[7], (bs, A, 2))
    ctr = anc_points[None] + 4.0 * jax.random.normal(ks[8], (bs, A, 2))
    pd_bboxes = jnp.concatenate([ctr - wh / 2, ctr + wh / 2], axis=-1)      # (bs, A, 4) xyxy
    pd_corners = jax.random.normal(ks[9], (bs, A, 8))

    gt_ctr = jax.random.uniform(ks[10], (bs, N, 2), minval=16.0, maxval=112.0)
    gt_wh = jax.random.uniform(ks[11], (bs, N, 2), minval=24.0, maxval=64.0)
    gt_bboxes = jnp.concatenate([gt_ctr - gt_wh / 2, gt_ctr + gt_wh / 2], axis=-1)
    gt_pro = jax.random.randint(ks[12], (bs, N, 1), 0, npro).astype(jnp.float32)
    gt_alp = jax.random.randint(ks[13], (bs, N, 1), 0, nalp).astype(jnp.float32)
    gt_ads = jax.random.randint(ks[14], (bs, N, 5), 0, nads).astype(jnp.float32)
    gt_corners = jax.random.normal(ks[15], (bs, N, 8)) * 10.0
    mask_gt = jnp.tile((jnp.arange(N) < 6).astype(jnp.float32)[None, :, None], (bs, 1, 1))

    outs = assigner(pd_pro_scores, pd_alp_scores, pd_ads_scores, pd_bboxes,
                    pd_corners, anc_points, gt_pro, gt_alp, gt_ads, gt_bboxes,
                    gt_corners, mask_gt)

    jax.tree_util.tree_map(lambda x: jax.block_until_ready(x), outs)

    (t_pro, t_alp, t_ads, t_bbox, t_corn, t_pro_sc, t_alp_sc, t_ads_sc, fg) = outs
    assert t_pro.shape == (bs, A) and t_bbox.shape == (bs, A, 4)
    assert t_corn.shape == (bs, A, 8) and t_pro_sc.shape == (bs, A, npro)
    assert t_alp_sc.shape == (bs, A, nalp) and t_ads_sc[0].shape == (bs, A, nads)
    assert fg.shape == (bs, A) and fg.dtype == jnp.bool_
    print("KERNEL_OK")
</pallas_src>

<mosaic_0001>
module attributes {stable_mosaic.version = 11 : i64} {
  func.func @_tal_kernel(%arg0: i32, %arg1: memref<1x31x256xf32, #tpu.memory_space<vmem>>, %arg2: memref<1x4x256xf32, #tpu.memory_space<vmem>>, %arg3: memref<2x256xf32, #tpu.memory_space<vmem>>, %arg4: memref<1x8x24xf32, #tpu.memory_space<vmem>>, %arg5: memref<1x24x256xf32, #tpu.memory_space<vmem>>) attributes {dimension_semantics = [#tpu.dimension_semantics<parallel>], iteration_bounds = array<i64: 2>, scalar_prefetch = 0 : i64, scratch_operands = 0 : i64, tpu.core_type = #tpu.core_type<tc>, window_params = [{transform_indices = @transform_0, window_bounds = array<i64: 1, 31, 256>}, {transform_indices = @transform_1, window_bounds = array<i64: 1, 4, 256>}, {pipeline_mode = #tpu.pipeline_mode<synchronous>, transform_indices = @transform_2, window_bounds = array<i64: 2, 256>}, {transform_indices = @transform_3, window_bounds = array<i64: 1, 8, 24>}, {transform_indices = @transform_4, window_bounds = array<i64: 1, 24, 256>}]} {
    %c0 = arith.constant 0 : index
    %c0_0 = arith.constant 0 : index
    %c0_1 = arith.constant 0 : index
    %0 = vector.load %arg1[%c0, %c0_0, %c0_1] : memref<1x31x256xf32, #tpu.memory_space<vmem>>, vector<1x31x256xf32>
    %1 = vector.shape_cast %0 : vector<1x31x256xf32> to vector<31x256xf32>
    %c0_2 = arith.constant 0 : index
    %c0_3 = arith.constant 0 : index
    %c0_4 = arith.constant 0 : index
    %2 = vector.load %arg2[%c0_2, %c0_3, %c0_4] : memref<1x4x256xf32, #tpu.memory_space<vmem>>, vector<1x4x256xf32>
    %3 = vector.shape_cast %2 : vector<1x4x256xf32> to vector<4x256xf32>
    %c0_5 = arith.constant 0 : index
    %c0_6 = arith.constant 0 : index
    %4 = vector.load %arg3[%c0_5, %c0_6] : memref<2x256xf32, #tpu.memory_space<vmem>>, vector<2x256xf32>
    %c0_7 = arith.constant 0 : index
    %c0_8 = arith.constant 0 : index
    %c0_9 = arith.constant 0 : index
    %5 = vector.load %arg4[%c0_7, %c0_8, %c0_9] : memref<1x8x24xf32, #tpu.memory_space<vmem>>, vector<1x8x24xf32>
    %6 = vector.shape_cast %5 : vector<1x8x24xf32> to vector<8x24xf32>
    %7 = vector.extract_strided_slice %6 {offsets = [0, 7], sizes = [8, 4], strides = [1, 1]} : vector<8x24xf32> to vector<8x4xf32>
    %8 = vector.extract_strided_slice %6 {offsets = [0, 19], sizes = [8, 1], strides = [1, 1]} : vector<8x24xf32> to vector<8x1xf32>
    %9 = vector.extract_strided_slice %6 {offsets = [0, 0], sizes = [8, 1], strides = [1, 1]} : vector<8x24xf32> to vector<8x1xf32>
    %10 = arith.fptosi %9 : vector<8x1xf32> to vector<8x1xi32>
    %11 = tpu.iota {dimensions = array<i32: 1>} : vector<8x31xi32>
    %12 = vector.broadcast %10 : vector<8x1xi32> to vector<8x31xi32>
    %13 = arith.cmpi eq, %11, %12 : vector<8x31xi32>
    %14 = arith.extui %13 : vector<8x31xi1> to vector<8x31xi32>
    %15 = arith.sitofp %14 : vector<8x31xi32> to vector<8x31xf32>
    %cst = arith.constant dense<0.000000e+00> : vector<8x256xf32>
    %16 = tpu.matmul %15, %1, %cst {dimension_numbers = #tpu.dot_dimension_numbers<[1], [0], [0], [1], [0, 0, 1, 1], [], []>} : vector<8x31xf32>, vector<31x256xf32>, vector<8x256xf32> -> vector<8x256xf32>
    %17 = vector.extract_strided_slice %7 {offsets = [0, 0], sizes = [8, 1], strides = [1, 1]} : vector<8x4xf32> to vector<8x1xf32>
    %18 = vector.extract_strided_slice %7 {offsets = [0, 1], sizes = [8, 1], strides = [1, 1]} : vector<8x4xf32> to vector<8x1xf32>
    %19 = vector.extract_strided_slice %7 {offsets = [0, 2], sizes = [8, 1], strides = [1, 1]} : vector<8x4xf32> to vector<8x1xf32>
    %20 = vector.extract_strided_slice %7 {offsets = [0, 3], sizes = [8, 1], strides = [1, 1]} : vector<8x4xf32> to vector<8x1xf32>
    %21 = vector.extract_strided_slice %3 {offsets = [0, 0], sizes = [1, 256], strides = [1, 1]} : vector<4x256xf32> to vector<1x256xf32>
    %22 = vector.extract_strided_slice %3 {offsets = [1, 0], sizes = [1, 256], strides = [1, 1]} : vector<4x256xf32> to vector<1x256xf32>
    %23 = vector.extract_strided_slice %3 {offsets = [2, 0], sizes = [1, 256], strides = [1, 1]} : vector<4x256xf32> to vector<1x256xf32>
    %24 = vector.extract_strided_slice %3 {offsets = [3, 0], sizes = [1, 256], strides = [1, 1]} : vector<4x256xf32> to vector<1x256xf32>
    %25 = vector.broadcast %19 : vector<8x1xf32> to vector<8x256xf32>
    %26 = vector.broadcast %23 : vector<1x256xf32> to vector<8x256xf32>
    %27 = arith.minimumf %25, %26 : vector<8x256xf32>
    %28 = vector.broadcast %17 : vector<8x1xf32> to vector<8x256xf32>
    %29 = vector.broadcast %21 : vector<1x256xf32> to vector<8x256xf32>
    %30 = arith.maximumf %28, %29 : vector<8x256xf32>
    %31 = arith.subf %27, %30 : vector<8x256xf32>
    %cst_10 = arith.constant 0.000000e+00 : f32
    %32 = vector.broadcast %cst_10 : f32 to vector<8x256xf32>
    %33 = arith.maximumf %31, %32 : vector<8x256xf32>
    %34 = vector.broadcast %20 : vector<8x1xf32> to vector<8x256xf32>
    %35 = vector.broadcast %24 : vector<1x256xf32> to vector<8x256xf32>
    %36 = arith.minimumf %34, %35 : vector<8x256xf32>
    %37 = vector.broadcast %18 : vector<8x1xf32> to vector<8x256xf32>
    %38 = vector.broadcast %22 : vector<1x256xf32> to vector<8x256xf32>
    %39 = arith.maximumf %37, %38 : vector<8x256xf32>
    %40 = arith.subf %36, %39 : vector<8x256xf32>
    %cst_11 = arith.constant 0.000000e+00 : f32
    %41 = vector.broadcast %cst_11 : f32 to vector<8x256xf32>
    %42 = arith.maximumf %40, %41 : vector<8x256xf32>
    %43 = arith.mulf %33, %42 : vector<8x256xf32>
    %44 = arith.subf %19, %17 : vector<8x1xf32>
    %cst_12 = arith.constant 0.000000e+00 : f32
    %45 = vector.broadcast %cst_12 : f32 to vector<8x1xf32>
    %46 = arith.maximumf %44, %45 : vector<8x1xf32>
    %47 = arith.subf %20, %18 : vector<8x1xf32>
    %cst_13 = arith.constant 0.000000e+00 : f32
    %48 = vector.broadcast %cst_13 : f32 to vector<8x1xf32>
    %49 = arith.maximumf %47, %48 : vector<8x1xf32>
    %50 = arith.mulf %46, %49 : vector<8x1xf32>
    %51 = arith.subf %23, %21 : vector<1x256xf32>
    %cst_14 = arith.constant 0.000000e+00 : f32
    %52 = vector.broadcast %cst_14 : f32 to vector<1x256xf32>
    %53 = arith.maximumf %51, %52 : vector<1x256xf32>
    %54 = arith.subf %24, %22 : vector<1x256xf32>
    %cst_15 = arith.constant 0.000000e+00 : f32
    %55 = vector.broadcast %cst_15 : f32 to vector<1x256xf32>
    %56 = arith.maximumf %54, %55 : vector<1x256xf32>
    %57 = arith.mulf %53, %56 : vector<1x256xf32>
    %58 = vector.broadcast %50 : vector<8x1xf32> to vector<8x256xf32>
    %59 = vector.broadcast %57 : vector<1x256xf32> to vector<8x256xf32>
    %60 = arith.addf %58, %59 : vector<8x256xf32>
    %61 = arith.subf %60, %43 : vector<8x256xf32>
    %cst_16 = arith.constant 9.99999971E-10 : f32
    %62 = vector.broadcast %cst_16 : f32 to vector<8x256xf32>
    %63 = arith.addf %61, %62 : vector<8x256xf32>
    %64 = arith.divf %43, %63 : vector<8x256xf32>
    %65 = arith.mulf %64, %64 : vector<8x256xf32>
    %66 = arith.mulf %65, %65 : vector<8x256xf32>
    %67 = arith.mulf %65, %66 : vector<8x256xf32>
    %68 = arith.mulf %16, %67 : vector<8x256xf32>
    %69 = vector.extract_strided_slice %4 {offsets = [0, 0], sizes = [1, 256], strides = [1, 1]} : vector<2x256xf32> to vector<1x256xf32>
    %70 = vector.extract_strided_slice %4 {offsets = [1, 0], sizes = [1, 256], strides = [1, 1]} : vector<2x256xf32> to vector<1x256xf32>
    %71 = vector.broadcast %69 : vector<1x256xf32> to vector<8x256xf32>
    %72 = vector.broadcast %17 : vector<8x1xf32> to vector<8x256xf32>
    %73 = arith.subf %71, %72 : vector<8x256xf32>
    %74 = vector.broadcast %70 : vector<1x256xf32> to vector<8x256xf32>
    %75 = vector.broadcast %18 : vector<8x1xf32> to vector<8x256xf32>
    %76 = arith.subf %74, %75 : vector<8x256xf32>
    %77 = arith.minimumf %73, %76 : vector<8x256xf32>
    %78 = vector.broadcast %19 : vector<8x1xf32> to vector<8x256xf32>
    %79 = vector.broadcast %69 : vector<1x256xf32> to vector<8x256xf32>
    %80 = arith.subf %78, %79 : vector<8x256xf32>
    %81 = vector.broadcast %20 : vector<8x1xf32> to vector<8x256xf32>
    %82 = vector.broadcast %70 : vector<1x256xf32> to vector<8x256xf32>
    %83 = arith.subf %81, %82 : vector<8x256xf32>
    %84 = arith.minimumf %80, %83 : vector<8x256xf32>
    %85 = arith.minimumf %77, %84 : vector<8x256xf32>
    %cst_17 = arith.constant 9.99999971E-10 : f32
    %86 = vector.broadcast %cst_17 : f32 to vector<8x256xf32>
    %87 = arith.cmpf ogt, %85, %86 : vector<8x256xf32>
    %88 = arith.extui %87 : vector<8x256xi1> to vector<8x256xi32>
    %89 = arith.sitofp %88 : vector<8x256xi32> to vector<8x256xf32>
    %90 = arith.mulf %68, %89 : vector<8x256xf32>
    %91 = tpu.iota {dimensions = array<i32: 1>} : vector<8x256xi32>
    %cst_18 = arith.constant 0.000000e+00 : f32
    %92 = vector.broadcast %cst_18 : f32 to vector<8x256xf32>
    %cst_19 = arith.constant dense<0xFF800000> : vector<8xf32>
    %93 = vector.multi_reduction <maximumf>, %90, %cst_19 [1] : vector<8x256xf32> to vector<8xf32>
    %94 = vector.shape_cast %93 : vector<8xf32> to vector<8x1xf32>
    %95 = vector.broadcast %94 : vector<8x1xf32> to vector<8x256xf32>
    %96 = arith.cmpf oeq, %90, %95 : vector<8x256xf32>
    %c256_i32 = arith.constant 256 : i32
    %97 = vector.broadcast %c256_i32 : i32 to vector<8x256xi32>
    %98 = arith.select %96, %91, %97 : vector<8x256xi1>, vector<8x256xi32>
    %cst_20 = arith.constant dense<2147483647> : vector<8xi32>
    %99 = vector.multi_reduction <minsi>, %98, %cst_20 [1] : vector<8x256xi32> to vector<8xi32>
    %100 = vector.shape_cast %99 : vector<8xi32> to vector<8x1xi32>
    %101 = vector.broadcast %100 : vector<8x1xi32> to vector<8x256xi32>
    %102 = arith.cmpi eq, %91, %101 : vector<8x256xi32>
    %103 = arith.extui %102 : vector<8x256xi1> to vector<8x256xi32>
    %104 = arith.sitofp %103 : vector<8x256xi32> to vector<8x256xf32>
    %105 = arith.addf %92, %104 : vector<8x256xf32>
    %cst_21 = arith.constant -1.000000e+30 : f32
    %106 = vector.broadcast %cst_21 : f32 to vector<8x256xf32>
    %107 = arith.select %102, %106, %90 : vector<8x256xi1>, vector<8x256xf32>
    %cst_22 = arith.constant dense<0xFF800000> : vector<8xf32>
    %108 = vector.multi_reduction <maximumf>, %107, %cst_22 [1] : vector<8x256xf32> to vector<8xf32>
    %109 = vector.shape_cast %108 : vector<8xf32> to vector<8x1xf32>
    %110 = vector.broadcast %109 : vector<8x1xf32> to vector<8x256xf32>
    %111 = arith.cmpf oeq, %107, %110 : vector<8x256xf32>
    %c256_i32_23 = arith.constant 256 : i32
    %112 = vector.broadcast %c256_i32_23 : i32 to vector<8x256xi32>
    %113 = arith.select %111, %91, %112 : vector<8x256xi1>, vector<8x256xi32>
    %cst_24 = arith.constant dense<2147483647> : vector<8xi32>
    %114 = vector.multi_reduction <minsi>, %113, %cst_24 [1] : vector<8x256xi32> to vector<8xi32>
    %115 = vector.shape_cast %114 : vector<8xi32> to vector<8x1xi32>
    %116 = vector.broadcast %115 : vector<8x1xi32> to vector<8x256xi32>
    %117 = arith.cmpi eq, %91, %116 : vector<8x256xi32>
    %118 = arith.extui %117 : vector<8x256xi1> to vector<8x256xi32>
    %119 = arith.sitofp %118 : vector<8x256xi32> to vector<8x256xf32>
    %120 = arith.addf %105, %119 : vector<8x256xf32>
    %cst_25 = arith.constant -1.000000e+30 : f32
    %121 = vector.broadcast %cst_25 : f32 to vector<8x256xf32>
    %122 = arith.select %117, %121, %107 : vector<8x256xi1>, vector<8x256xf32>
    %cst_26 = arith.constant dense<0xFF800000> : vector<8xf32>
    %123 = vector.multi_reduction <maximumf>, %122, %cst_26 [1] : vector<8x256xf32> to vector<8xf32>
    %124 = vector.shape_cast %123 : vector<8xf32> to vector<8x1xf32>
    %125 = vector.broadcast %124 : vector<8x1xf32> to vector<8x256xf32>
    %126 = arith.cmpf oeq, %122, %125 : vector<8x256xf32>
    %c256_i32_27 = arith.constant 256 : i32
    %127 = vector.broadcast %c256_i32_27 : i32 to vector<8x256xi32>
    %128 = arith.select %126, %91, %127 : vector<8x256xi1>, vector<8x256xi32>
    %cst_28 = arith.constant dense<2147483647> : vector<8xi32>
    %129 = vector.multi_reduction <minsi>, %128, %cst_28 [1] : vector<8x256xi32> to vector<8xi32>
    %130 = vector.shape_cast %129 : vector<8xi32> to vector<8x1xi32>
    %131 = vector.broadcast %130 : vector<8x1xi32> to vector<8x256xi32>
    %132 = arith.cmpi eq, %91, %131 : vector<8x256xi32>
    %133 = arith.extui %132 : vector<8x256xi1> to vector<8x256xi32>
    %134 = arith.sitofp %133 : vector<8x256xi32> to vector<8x256xf32>
    %135 = arith.addf %120, %134 : vector<8x256xf32>
    %cst_29 = arith.constant -1.000000e+30 : f32
    %136 = vector.broadcast %cst_29 : f32 to vector<8x256xf32>
    %137 = arith.select %132, %136, %122 : vector<8x256xi1>, vector<8x256xf32>
    %cst_30 = arith.constant dense<0xFF800000> : vector<8xf32>
    %138 = vector.multi_reduction <maximumf>, %137, %cst_30 [1] : vector<8x256xf32> to vector<8xf32>
    %139 = vector.shape_cast %138 : vector<8xf32> to vector<8x1xf32>
    %140 = vector.broadcast %139 : vector<8x1xf32> to vector<8x256xf32>
    %141 = arith.cmpf oeq, %137, %140 : vector<8x256xf32>
    %c256_i32_31 = arith.constant 256 : i32
    %142 = vector.broadcast %c256_i32_31 : i32 to vector<8x256xi32>
    %143 = arith.select %141, %91, %142 : vector<8x256xi1>, vector<8x256xi32>
    %cst_32 = arith.constant dense<2147483647> : vector<8xi32>
    %144 = vector.multi_reduction <minsi>, %143, %cst_32 [1] : vector<8x256xi32> to vector<8xi32>
    %145 = vector.shape_cast %144 : vector<8xi32> to vector<8x1xi32>
    %146 = vector.broadcast %145 : vector<8x1xi32> to vector<8x256xi32>
    %147 = arith.cmpi eq, %91, %146 : vector<8x256xi32>
    %148 = arith.extui %147 : vector<8x256xi1> to vector<8x256xi32>
    %149 = arith.sitofp %148 : vector<8x256xi32> to vector<8x256xf32>
    %150 = arith.addf %135, %149 : vector<8x256xf32>
    %cst_33 = arith.constant -1.000000e+30 : f32
    %151 = vector.broadcast %cst_33 : f32 to vector<8x256xf32>
    %152 = arith.select %147, %151, %137 : vector<8x256xi1>, vector<8x256xf32>
    %cst_34 = arith.constant dense<0xFF800000> : vector<8xf32>
    %153 = vector.multi_reduction <maximumf>, %152, %cst_34 [1] : vector<8x256xf32> to vector<8xf32>
    %154 = vector.shape_cast %153 : vector<8xf32> to vector<8x1xf32>
    %155 = vector.broadcast %154 : vector<8x1xf32> to vector<8x256xf32>
    %156 = arith.cmpf oeq, %152, %155 : vector<8x256xf32>
    %c256_i32_35 = arith.constant 256 : i32
    %157 = vector.broadcast %c256_i32_35 : i32 to vector<8x256xi32>
    %158 = arith.select %156, %91, %157 : vector<8x256xi1>, vector<8x256xi32>
    %cst_36 = arith.constant dense<2147483647> : vector<8xi32>
    %159 = vector.multi_reduction <minsi>, %158, %cst_36 [1] : vector<8x256xi32> to vector<8xi32>
    %160 = vector.shape_cast %159 : vector<8xi32> to vector<8x1xi32>
    %161 = vector.broadcast %160 : vector<8x1xi32> to vector<8x256xi32>
    %162 = arith.cmpi eq, %91, %161 : vector<8x256xi32>
    %163 = arith.extui %162 : vector<8x256xi1> to vector<8x256xi32>
    %164 = arith.sitofp %163 : vector<8x256xi32> to vector<8x256xf32>
    %165 = arith.addf %150, %164 : vector<8x256xf32>
    %cst_37 = arith.constant -1.000000e+30 : f32
    %166 = vector.broadcast %cst_37 : f32 to vector<8x256xf32>
    %167 = arith.select %162, %166, %152 : vector<8x256xi1>, vector<8x256xf32>
    %cst_38 = arith.constant dense<0xFF800000> : vector<8xf32>
    %168 = vector.multi_reduction <maximumf>, %167, %cst_38 [1] : vector<8x256xf32> to vector<8xf32>
    %169 = vector.shape_cast %168 : vector<8xf32> to vector<8x1xf32>
    %170 = vector.broadcast %169 : vector<8x1xf32> to vector<8x256xf32>
    %171 = arith.cmpf oeq, %167, %170 : vector<8x256xf32>
    %c256_i32_39 = arith.constant 256 : i32
    %172 = vector.broadcast %c256_i32_39 : i32 to vector<8x256xi32>
    %173 = arith.select %171, %91, %172 : vector<8x256xi1>, vector<8x256xi32>
    %cst_40 = arith.constant dense<2147483647> : vector<8xi32>
    %174 = vector.multi_reduction <minsi>, %173, %cst_40 [1] : vector<8x256xi32> to vector<8xi32>
    %175 = vector.shape_cast %174 : vector<8xi32> to vector<8x1xi32>
    %176 = vector.broadcast %175 : vector<8x1xi32> to vector<8x256xi32>
    %177 = arith.cmpi eq, %91, %176 : vector<8x256xi32>
    %178 = arith.extui %177 : vector<8x256xi1> to vector<8x256xi32>
    %179 = arith.sitofp %178 : vector<8x256xi32> to vector<8x256xf32>
    %180 = arith.addf %165, %179 : vector<8x256xf32>
    %cst_41 = arith.constant -1.000000e+30 : f32
    %181 = vector.broadcast %cst_41 : f32 to vector<8x256xf32>
    %182 = arith.select %177, %181, %167 : vector<8x256xi1>, vector<8x256xf32>
    %cst_42 = arith.constant dense<0xFF800000> : vector<8xf32>
    %183 = vector.multi_reduction <maximumf>, %182, %cst_42 [1] : vector<8x256xf32> to vector<8xf32>
    %184 = vector.shape_cast %183 : vector<8xf32> to vector<8x1xf32>
    %185 = vector.broadcast %184 : vector<8x1xf32> to vector<8x256xf32>
    %186 = arith.cmpf oeq, %182, %185 : vector<8x256xf32>
    %c256_i32_43 = arith.constant 256 : i32
    %187 = vector.broadcast %c256_i32_43 : i32 to vector<8x256xi32>
    %188 = arith.select %186, %91, %187 : vector<8x256xi1>, vector<8x256xi32>
    %cst_44 = arith.constant dense<2147483647> : vector<8xi32>
    %189 = vector.multi_reduction <minsi>, %188, %cst_44 [1] : vector<8x256xi32> to vector<8xi32>
    %190 = vector.shape_cast %189 : vector<8xi32> to vector<8x1xi32>
    %191 = vector.broadcast %190 : vector<8x1xi32> to vector<8x256xi32>
    %192 = arith.cmpi eq, %91, %191 : vector<8x256xi32>
    %193 = arith.extui %192 : vector<8x256xi1> to vector<8x256xi32>
    %194 = arith.sitofp %193 : vector<8x256xi32> to vector<8x256xf32>
    %195 = arith.addf %180, %194 : vector<8x256xf32>
    %cst_45 = arith.constant -1.000000e+30 : f32
    %196 = vector.broadcast %cst_45 : f32 to vector<8x256xf32>
    %197 = arith.select %192, %196, %182 : vector<8x256xi1>, vector<8x256xf32>
    %cst_46 = arith.constant dense<0xFF800000> : vector<8xf32>
    %198 = vector.multi_reduction <maximumf>, %197, %cst_46 [1] : vector<8x256xf32> to vector<8xf32>
    %199 = vector.shape_cast %198 : vector<8xf32> to vector<8x1xf32>
    %200 = vector.broadcast %199 : vector<8x1xf32> to vector<8x256xf32>
    %201 = arith.cmpf oeq, %197, %200 : vector<8x256xf32>
    %c256_i32_47 = arith.constant 256 : i32
    %202 = vector.broadcast %c256_i32_47 : i32 to vector<8x256xi32>
    %203 = arith.select %201, %91, %202 : vector<8x256xi1>, vector<8x256xi32>
    %cst_48 = arith.constant dense<2147483647> : vector<8xi32>
    %204 = vector.multi_reduction <minsi>, %203, %cst_48 [1] : vector<8x256xi32> to vector<8xi32>
    %205 = vector.shape_cast %204 : vector<8xi32> to vector<8x1xi32>
    %206 = vector.broadcast %205 : vector<8x1xi32> to vector<8x256xi32>
    %207 = arith.cmpi eq, %91, %206 : vector<8x256xi32>
    %208 = arith.extui %207 : vector<8x256xi1> to vector<8x256xi32>
    %209 = arith.sitofp %208 : vector<8x256xi32> to vector<8x256xf32>
    %210 = arith.addf %195, %209 : vector<8x256xf32>
    %cst_49 = arith.constant -1.000000e+30 : f32
    %211 = vector.broadcast %cst_49 : f32 to vector<8x256xf32>
    %212 = arith.select %207, %211, %197 : vector<8x256xi1>, vector<8x256xf32>
    %cst_50 = arith.constant dense<0xFF800000> : vector<8xf32>
    %213 = vector.multi_reduction <maximumf>, %212, %cst_50 [1] : vector<8x256xf32> to vector<8xf32>
    %214 = vector.shape_cast %213 : vector<8xf32> to vector<8x1xf32>
    %215 = vector.broadcast %214 : vector<8x1xf32> to vector<8x256xf32>
    %216 = arith.cmpf oeq, %212, %215 : vector<8x256xf32>
    %c256_i32_51 = arith.constant 256 : i32
    %217 = vector.broadcast %c256_i32_51 : i32 to vector<8x256xi32>
    %218 = arith.select %216, %91, %217 : vector<8x256xi1>, vector<8x256xi32>
    %cst_52 = arith.constant dense<2147483647> : vector<8xi32>
    %219 = vector.multi_reduction <minsi>, %218, %cst_52 [1] : vector<8x256xi32> to vector<8xi32>
    %220 = vector.shape_cast %219 : vector<8xi32> to vector<8x1xi32>
    %221 = vector.broadcast %220 : vector<8x1xi32> to vector<8x256xi32>
    %222 = arith.cmpi eq, %91, %221 : vector<8x256xi32>
    %223 = arith.extui %222 : vector<8x256xi1> to vector<8x256xi32>
    %224 = arith.sitofp %223 : vector<8x256xi32> to vector<8x256xf32>
    %225 = arith.addf %210, %224 : vector<8x256xf32>
    %cst_53 = arith.constant -1.000000e+30 : f32
    %226 = vector.broadcast %cst_53 : f32 to vector<8x256xf32>
    %227 = arith.select %222, %226, %212 : vector<8x256xi1>, vector<8x256xf32>
    %cst_54 = arith.constant dense<0xFF800000> : vector<8xf32>
    %228 = vector.multi_reduction <maximumf>, %227, %cst_54 [1] : vector<8x256xf32> to vector<8xf32>
    %229 = vector.shape_cast %228 : vector<8xf32> to vector<8x1xf32>
    %230 = vector.broadcast %229 : vector<8x1xf32> to vector<8x256xf32>
    %231 = arith.cmpf oeq, %227, %230 : vector<8x256xf32>
    %c256_i32_55 = arith.constant 256 : i32
    %232 = vector.broadcast %c256_i32_55 : i32 to vector<8x256xi32>
    %233 = arith.select %231, %91, %232 : vector<8x256xi1>, vector<8x256xi32>
    %cst_56 = arith.constant dense<2147483647> : vector<8xi32>
    %234 = vector.multi_reduction <minsi>, %233, %cst_56 [1] : vector<8x256xi32> to vector<8xi32>
    %235 = vector.shape_cast %234 : vector<8xi32> to vector<8x1xi32>
    %236 = vector.broadcast %235 : vector<8x1xi32> to vector<8x256xi32>
    %237 = arith.cmpi eq, %91, %236 : vector<8x256xi32>
    %238 = arith.extui %237 : vector<8x256xi1> to vector<8x256xi32>
    %239 = arith.sitofp %238 : vector<8x256xi32> to vector<8x256xf32>
    %240 = arith.addf %225, %239 : vector<8x256xf32>
    %cst_57 = arith.constant -1.000000e+30 : f32
    %241 = vector.broadcast %cst_57 : f32 to vector<8x256xf32>
    %242 = arith.select %237, %241, %227 : vector<8x256xi1>, vector<8x256xf32>
    %cst_58 = arith.constant dense<0xFF800000> : vector<8xf32>
    %243 = vector.multi_reduction <maximumf>, %242, %cst_58 [1] : vector<8x256xf32> to vector<8xf32>
    %244 = vector.shape_cast %243 : vector<8xf32> to vector<8x1xf32>
    %245 = vector.broadcast %244 : vector<8x1xf32> to vector<8x256xf32>
    %246 = arith.cmpf oeq, %242, %245 : vector<8x256xf32>
    %c256_i32_59 = arith.constant 256 : i32
    %247 = vector.broadcast %c256_i32_59 : i32 to vector<8x256xi32>
    %248 = arith.select %246, %91, %247 : vector<8x256xi1>, vector<8x256xi32>
    %cst_60 = arith.constant dense<2147483647> : vector<8xi32>
    %249 = vector.multi_reduction <minsi>, %248, %cst_60 [1] : vector<8x256xi32> to vector<8xi32>
    %250 = vector.shape_cast %249 : vector<8xi32> to vector<8x1xi32>
    %251 = vector.broadcast %250 : vector<8x1xi32> to vector<8x256xi32>
    %252 = arith.cmpi eq, %91, %251 : vector<8x256xi32>
    %253 = arith.extui %252 : vector<8x256xi1> to vector<8x256xi32>
    %254 = arith.sitofp %253 : vector<8x256xi32> to vector<8x256xf32>
    %255 = arith.addf %240, %254 : vector<8x256xf32>
    %cst_61 = arith.constant -1.000000e+30 : f32
    %256 = vector.broadcast %cst_61 : f32 to vector<8x256xf32>
    %257 = arith.select %252, %256, %242 : vector<8x256xi1>, vector<8x256xf32>
    %cst_62 = arith.constant dense<0xFF800000> : vector<8xf32>
    %258 = vector.multi_reduction <maximumf>, %257, %cst_62 [1] : vector<8x256xf32> to vector<8xf32>
    %259 = vector.shape_cast %258 : vector<8xf32> to vector<8x1xf32>
    %260 = vector.broadcast %259 : vector<8x1xf32> to vector<8x256xf32>
    %261 = arith.cmpf oeq, %257, %260 : vector<8x256xf32>
    %c256_i32_63 = arith.constant 256 : i32
    %262 = vector.broadcast %c256_i32_63 : i32 to vector<8x256xi32>
    %263 = arith.select %261, %91, %262 : vector<8x256xi1>, vector<8x256xi32>
    %cst_64 = arith.constant dense<2147483647> : vector<8xi32>
    %264 = vector.multi_reduction <minsi>, %263, %cst_64 [1] : vector<8x256xi32> to vector<8xi32>
    %265 = vector.shape_cast %264 : vector<8xi32> to vector<8x1xi32>
    %266 = vector.broadcast %265 : vector<8x1xi32> to vector<8x256xi32>
    %267 = arith.cmpi eq, %91, %266 : vector<8x256xi32>
    %268 = arith.extui %267 : vector<8x256xi1> to vector<8x256xi32>
    %269 = arith.sitofp %268 : vector<8x256xi32> to vector<8x256xf32>
    %270 = arith.addf %255, %269 : vector<8x256xf32>
    %cst_65 = arith.constant -1.000000e+30 : f32
    %271 = vector.broadcast %cst_65 : f32 to vector<8x256xf32>
    %272 = arith.select %267, %271, %257 : vector<8x256xi1>, vector<8x256xf32>
    %cst_66 = arith.constant dense<0xFF800000> : vector<8xf32>
    %273 = vector.multi_reduction <maximumf>, %272, %cst_66 [1] : vector<8x256xf32> to vector<8xf32>
    %274 = vector.shape_cast %273 : vector<8xf32> to vector<8x1xf32>
    %275 = vector.broadcast %274 : vector<8x1xf32> to vector<8x256xf32>
    %276 = arith.cmpf oeq, %272, %275 : vector<8x256xf32>
    %c256_i32_67 = arith.constant 256 : i32
    %277 = vector.broadcast %c256_i32_67 : i32 to vector<8x256xi32>
    %278 = arith.select %276, %91, %277 : vector<8x256xi1>, vector<8x256xi32>
    %cst_68 = arith.constant dense<2147483647> : vector<8xi32>
    %279 = vector.multi_reduction <minsi>, %278, %cst_68 [1] : vector<8x256xi32> to vector<8xi32>
    %280 = vector.shape_cast %279 : vector<8xi32> to vector<8x1xi32>
    %281 = vector.broadcast %280 : vector<8x1xi32> to vector<8x256xi32>
    %282 = arith.cmpi eq, %91, %281 : vector<8x256xi32>
    %283 = arith.extui %282 : vector<8x256xi1> to vector<8x256xi32>
    %284 = arith.sitofp %283 : vector<8x256xi32> to vector<8x256xf32>
    %285 = arith.addf %270, %284 : vector<8x256xf32>
    %286 = vector.broadcast %8 : vector<8x1xf32> to vector<8x256xf32>
    %287 = arith.mulf %285, %286 : vector<8x256xf32>
    %288 = arith.mulf %287, %89 : vector<8x256xf32>
    %289 = tpu.iota {dimensions = array<i32: 0>} : vector<8x256xi32>
    %cst_69 = arith.constant dense<0.000000e+00> : vector<256xf32>
    %290 = vector.multi_reduction <add>, %288, %cst_69 [0] : vector<8x256xf32> to vector<256xf32>
    %291 = vector.shape_cast %290 : vector<256xf32> to vector<1x256xf32>
    %cst_70 = arith.constant dense<0xFF800000> : vector<256xf32>
    %292 = vector.multi_reduction <maximumf>, %64, %cst_70 [0] : vector<8x256xf32> to vector<256xf32>
    %293 = vector.shape_cast %292 : vector<256xf32> to vector<1x256xf32>
    %294 = vector.broadcast %293 : vector<1x256xf32> to vector<8x256xf32>
    %295 = arith.cmpf oeq, %64, %294 : vector<8x256xf32>
    %c8_i32 = arith.constant 8 : i32
    %296 = vector.broadcast %c8_i32 : i32 to vector<8x256xi32>
    %297 = arith.select %295, %289, %296 : vector<8x256xi1>, vector<8x256xi32>
    %cst_71 = arith.constant dense<2147483647> : vector<256xi32>
    %298 = vector.multi_reduction <minsi>, %297, %cst_71 [0] : vector<8x256xi32> to vector<256xi32>
    %299 = vector.shape_cast %298 : vector<256xi32> to vector<1x256xi32>
    %cst_72 = arith.constant 1.000000e+00 : f32
    %300 = vector.broadcast %cst_72 : f32 to vector<1x256xf32>
    %301 = arith.cmpf ogt, %291, %300 : vector<1x256xf32>
    %302 = vector.broadcast %299 : vector<1x256xi32> to vector<8x256xi32>
    %303 = arith.cmpi eq, %289, %302 : vector<8x256xi32>
    %304 = arith.extui %303 : vector<8x256xi1> to vector<8x256xi32>
    %305 = arith.sitofp %304 : vector<8x256xi32> to vector<8x256xf32>
    %306 = vector.shape_cast %301 : vector<1x256xi1> to vector<1x256xi1>
    %307 = vector.broadcast %306 : vector<1x256xi1> to vector<8x256xi1>
    %308 = arith.select %307, %305, %288 : vector<8x256xi1>, vector<8x256xf32>
    %cst_73 = arith.constant dense<0.000000e+00> : vector<256xf32>
    %309 = vector.multi_reduction <add>, %308, %cst_73 [0] : vector<8x256xf32> to vector<256xf32>
    %310 = vector.shape_cast %309 : vector<256xf32> to vector<1x256xf32>
    %cst_74 = arith.constant dense<0xFF800000> : vector<256xf32>
    %311 = vector.multi_reduction <maximumf>, %308, %cst_74 [0] : vector<8x256xf32> to vector<256xf32>
    %312 = vector.shape_cast %311 : vector<256xf32> to vector<1x256xf32>
    %313 = vector.broadcast %312 : vector<1x256xf32> to vector<8x256xf32>
    %314 = arith.cmpf oeq, %308, %313 : vector<8x256xf32>
    %c8_i32_75 = arith.constant 8 : i32
    %315 = vector.broadcast %c8_i32_75 : i32 to vector<8x256xi32>
    %316 = arith.select %314, %289, %315 : vector<8x256xi1>, vector<8x256xi32>
    %cst_76 = arith.constant dense<2147483647> : vector<256xi32>
    %317 = vector.multi_reduction <minsi>, %316, %cst_76 [0] : vector<8x256xi32> to vector<256xi32>
    %318 = vector.shape_cast %317 : vector<256xi32> to vector<1x256xi32>
    %319 = vector.broadcast %318 : vector<1x256xi32> to vector<8x256xi32>
    %320 = arith.cmpi eq, %289, %319 : vector<8x256xi32>
    %321 = arith.extui %320 : vector<8x256xi1> to vector<8x256xi32>
    %322 = arith.sitofp %321 : vector<8x256xi32> to vector<8x256xf32>
    %cst_77 = arith.constant dense<0.000000e+00> : vector<24x256xf32>
    %323 = tpu.matmul %6, %322, %cst_77 {dimension_numbers = #tpu.dot_dimension_numbers<[0], [0], [1], [1], [0, 1, 1, 1], [], []>} : vector<8x24xf32>, vector<8x256xf32>, vector<24x256xf32> -> vector<24x256xf32>
    %324 = arith.mulf %68, %308 : vector<8x256xf32>
    %cst_78 = arith.constant dense<0xFF800000> : vector<8xf32>
    %325 = vector.multi_reduction <maximumf>, %324, %cst_78 [1] : vector<8x256xf32> to vector<8xf32>
    %326 = vector.shape_cast %325 : vector<8xf32> to vector<8x1xf32>
    %327 = arith.mulf %64, %308 : vector<8x256xf32>
    %cst_79 = arith.constant dense<0xFF800000> : vector<8xf32>
    %328 = vector.multi_reduction <maximumf>, %327, %cst_79 [1] : vector<8x256xf32> to vector<8xf32>
    %329 = vector.shape_cast %328 : vector<8xf32> to vector<8x1xf32>
    %330 = vector.broadcast %329 : vector<8x1xf32> to vector<8x256xf32>
    %331 = arith.mulf %324, %330 : vector<8x256xf32>
    %cst_80 = arith.constant 9.99999971E-10 : f32
    %332 = vector.broadcast %cst_80 : f32 to vector<8x1xf32>
    %333 = arith.addf %326, %332 : vector<8x1xf32>
    %334 = vector.broadcast %333 : vector<8x1xf32> to vector<8x256xf32>
    %335 = arith.divf %331, %334 : vector<8x256xf32>
    %cst_81 = arith.constant dense<0xFF800000> : vector<256xf32>
    %336 = vector.multi_reduction <maximumf>, %335, %cst_81 [0] : vector<8x256xf32> to vector<256xf32>
    %337 = vector.shape_cast %336 : vector<256xf32> to vector<1x256xf32>
    %338 = tpu.iota {dimensions = array<i32: 0>} : vector<24x1xi32>
    %339 = arith.fptosi %323 : vector<24x256xf32> to vector<24x256xi32>
    %c0_i32 = arith.constant 0 : i32
    %340 = vector.broadcast %c0_i32 : i32 to vector<24x256xi32>
    %341 = arith.maxsi %339, %340 : vector<24x256xi32>
    %342 = arith.sitofp %341 : vector<24x256xi32> to vector<24x256xf32>
    %c7_i32 = arith.constant 7 : i32
    %343 = vector.broadcast %c7_i32 : i32 to vector<24x1xi32>
    %344 = arith.cmpi slt, %338, %343 : vector<24x1xi32>
    %345 = vector.shape_cast %344 : vector<24x1xi1> to vector<24x1xi1>
    %346 = vector.broadcast %345 : vector<24x1xi1> to vector<24x256xi1>
    %347 = arith.select %346, %342, %323 : vector<24x256xi1>, vector<24x256xf32>
    %c19_i32 = arith.constant 19 : i32
    %348 = vector.broadcast %c19_i32 : i32 to vector<24x1xi32>
    %349 = arith.cmpi eq, %338, %348 : vector<24x1xi32>
    %350 = vector.shape_cast %349 : vector<24x1xi1> to vector<24x1xi1>
    %351 = vector.broadcast %350 : vector<24x1xi1> to vector<24x256xi1>
    %352 = vector.shape_cast %310 : vector<1x256xf32> to vector<1x256xf32>
    %353 = vector.broadcast %352 : vector<1x256xf32> to vector<24x256xf32>
    %354 = arith.select %351, %353, %347 : vector<24x256xi1>, vector<24x256xf32>
    %c20_i32 = arith.constant 20 : i32
    %355 = vector.broadcast %c20_i32 : i32 to vector<24x1xi32>
    %356 = arith.cmpi eq, %338, %355 : vector<24x1xi32>
    %357 = vector.shape_cast %356 : vector<24x1xi1> to vector<24x1xi1>
    %358 = vector.broadcast %357 : vector<24x1xi1> to vector<24x256xi1>
    %359 = vector.shape_cast %337 : vector<1x256xf32> to vector<1x256xf32>
    %360 = vector.broadcast %359 : vector<1x256xf32> to vector<24x256xf32>
    %361 = arith.select %358, %360, %354 : vector<24x256xi1>, vector<24x256xf32>
    %c0_82 = arith.constant 0 : index
    %c0_83 = arith.constant 0 : index
    %c0_84 = arith.constant 0 : index
    %362 = vector.load %arg5[%c0_82, %c0_83, %c0_84] : memref<1x24x256xf32, #tpu.memory_space<vmem>>, vector<1x24x256xf32>
    %363 = vector.shape_cast %362 : vector<1x24x256xf32> to vector<24x256xf32>
    %364 = vector.shape_cast %361 : vector<24x256xf32> to vector<1x24x256xf32>
    tpu.vector_store %arg5[%c0_82, %c0_83, %c0_84], %364 {strides = array<i32>} : memref<1x24x256xf32, #tpu.memory_space<vmem>>, vector<1x24x256xf32>,
    return
  }
  func.func @transform_0(%arg0: i32) -> (i32, i32, i32) {
    %c0_i32 = arith.constant 0 : i32
    %c0_i32_0 = arith.constant 0 : i32
    %c0_i32_1 = arith.constant 0 : i32
    return %arg0, %c0_i32, %c0_i32_0 : i32, i32, i32
  }
  func.func @transform_1(%arg0: i32) -> (i32, i32, i32) {
    %c0_i32 = arith.constant 0 : i32
    %c0_i32_0 = arith.constant 0 : i32
    %c0_i32_1 = arith.constant 0 : i32
    return %arg0, %c0_i32, %c0_i32_0 : i32, i32, i32
  }
  func.func @transform_2(%arg0: i32) -> (i32, i32) {
    %c0_i32 = arith.constant 0 : i32
    %c0_i32_0 = arith.constant 0 : i32
    %c0_i32_1 = arith.constant 0 : i32
    return %c0_i32, %c0_i32_0 : i32, i32
  }
  func.func @transform_3(%arg0: i32) -> (i32, i32, i32) {
    %c0_i32 = arith.constant 0 : i32
    %c0_i32_0 = arith.constant 0 : i32
    %c0_i32_1 = arith.constant 0 : i32
    return %arg0, %c0_i32, %c0_i32_0 : i32, i32, i32
  }
  func.func @transform_4(%arg0: i32) -> (i32, i32, i32) {
    %c0_i32 = arith.constant 0 : i32
    %c0_i32_0 = arith.constant 0 : i32
    %c0_i32_1 = arith.constant 0 : i32
    return %arg0, %c0_i32, %c0_i32_0 : i32, i32, i32
  }
}

</mosaic_0001>

<llo_original>
// kernel: tpu_custom_call.1
$region0: #{tpu_custom_call.1}
  #allocation0 [shape = 'u32[]', space=smem, size = 0x4, offset = 0x4, fixed_abs, tag = 'smem constant byte address 0x4 - core index']
  #allocation1 [shape = 'u32[72,128]{1,0:T(1,128)}', space=vmem, size = 0x9000, scoped, tag = 'internal scratch']
  %s0 = inlined_call_operand.vmem [shape: f32[2,31,256], index: 0, kind: input, shape index: {}]
  %s1 = inlined_call_operand.vmem [shape: f32[2,4,256], index: 1, kind: input, shape index: {}]
  %s2 = inlined_call_operand.vmem [shape: f32[2,256], index: 2, kind: input, shape index: {}]
  %s3 = inlined_call_operand.vmem [shape: f32[2,8,24], index: 3, kind: input, shape index: {}]
  %s4 = inlined_call_operand.hbm [shape: f32[2,24,256], index: 4, kind: output, shape index: {}]
  %s5 = sld [smem:[#allocation0]]
  $region49: #{tpu_custom_call.1} parent=0
    _
  %s7 = ssub.s32 1, %s5
  %s8 = scalar_select 0, %s7, %s5
  $region1: #{tpu_custom_call.1} parent=0
    #allocation2 [shape = 'u8[49152]{0}', space=vmem, size = 0xc000, scoped, tag = 'output window, operand 0']
    #allocation3 [shape = 's32[2]{0}', space=sflag, size = 0x8, scoped, tag = 'scoped memory for tpu_custom_call.1']
    %9 = vsyncpa [#allocation3], 0
    %s10 = scalar_lea.sflag [#allocation3], 1
    %11 = vsyncpa %s10, 0
    loop: start=0, step=1, limit=4
    $region2: #{tpu_custom_call.1} parent=1 // loop_pre_header
      _
    $region3: #{tpu_custom_call.1} parent=1 // loop_header
      %s13 = sphi 0, %s17
      %p14 = scmp.ge.s32.totalorder %s13, 4
      %s23 = sphi 0, %s25
      %s26 = sphi 0, %s23
      %s27 = sphi 0, %s26
      %s43 = sphi 0, %s27
      %s49 = sphi 0, %s51
      %s52 = sphi 0, %s49
      %s53 = sphi 0, %s52
      %s69 = sphi 0, %s53
      %s73 = sphi 0, %s73
      %s75 = sphi 0, %s73
      %s76 = sphi 0, %s75
      %s90 = sphi 0, %s76
      %s96 = sphi 0, %s98
      %s99 = sphi 0, %s96
      %s100 = sphi 0, %s99
      %s116 = sphi 0, %s100
      %s122 = sphi 0, %s124
      %s125 = sphi 0, %s122
      %s126 = sphi 0, %s125
      %s142 = sphi 0, %s126
    $region4: #{tpu_custom_call.1} parent=1 // loop_header_branch
      %16 = sbr.rel (%p14) target = $region8
    $region5: #{tpu_custom_call.1} parent=1 // loop_body
      %s18 = ssub.s32 %s13, 1
      %s19 = ssub.s32 %s13, 2
      %s20 = sadd.s32 %s13, 1
      %s21 = ssub.s32 %s13, %s20
      %p22 = scmp.eq.s32.totalorder %s21, 0
      %s24 = sadd.s32 %s23, 1
      %s25 = scalar_select %p22, %s23, %s24
      %p28 = pneg %p22
      %p29 = scmp.eq.s32.totalorder %s13, 1
      %p30 = por %p28, %p29
      %p31 = scmp.ne.s32.totalorder %s23, %s26
      %p32 = scmp.eq.s32.totalorder %s13, 0
      %p33 = por %p31, %p32
      %p34 = scmp.ne.s32.totalorder %s23, %s26
      %p35 = scmp.eq.s32.totalorder %s18, 1
      %p36 = por %p34, %p35
      %p37 = scmp.ne.s32.totalorder %s26, %s27
      %p38 = scmp.eq.s32.totalorder %s18, 0
      %p39 = por %p37, %p38
      %p40 = scmp.ne.s32.totalorder %s26, %s27
      %p41 = scmp.eq.s32.totalorder %s19, 1
      %p42 = por %p40, %p41
      %p44 = scmp.ne.s32.totalorder %s27, %s43
      %p45 = scmp.eq.s32.totalorder %s19, 0
      %p46 = por %p44, %p45
      %s47 = ssub.s32 %s13, %s20
      %p48 = scmp.eq.s32.totalorder %s47, 0
      %s50 = sadd.s32 %s49, 1
      %s51 = scalar_select %p48, %s49, %s50
      %p54 = pneg %p48
      %p55 = scmp.eq.s32.totalorder %s13, 1
      %p56 = por %p54, %p55
      %p57 = scmp.ne.s32.totalorder %s49, %s52
      %p58 = scmp.eq.s32.totalorder %s13, 0
      %p59 = por %p57, %p58
      %p60 = scmp.ne.s32.totalorder %s49, %s52
      %p61 = scmp.eq.s32.totalorder %s18, 1
      %p62 = por %p60, %p61
      %p63 = scmp.ne.s32.totalorder %s52, %s53
      %p64 = scmp.eq.s32.totalorder %s18, 0
      %p65 = por %p63, %p64
      %p66 = scmp.ne.s32.totalorder %s52, %s53
      %p67 = scmp.eq.s32.totalorder %s19, 1
      %p68 = por %p66, %p67
      %p70 = scmp.ne.s32.totalorder %s53, %s69
      %p71 = scmp.eq.s32.totalorder %s19, 0
      %p72 = por %p70, %p71
      %s74 = sadd.s32 %s73, 1
      %p77 = scmp.eq.s32.totalorder %s13, 1
      %p78 = scmp.ne.s32.totalorder %s73, %s75
      %p79 = scmp.eq.s32.totalorder %s13, 0
      %p80 = por %p78, %p79
      %p81 = scmp.ne.s32.totalorder %s73, %s75
      %p82 = scmp.eq.s32.totalorder %s18, 1
      %p83 = por %p81, %p82
      %p84 = scmp.ne.s32.totalorder %s75, %s76
      %p85 = scmp.eq.s32.totalorder %s18, 0
      %p86 = por %p84, %p85
      %p87 = scmp.ne.s32.totalorder %s75, %s76
      %p88 = scmp.eq.s32.totalorder %s19, 1
      %p89 = por %p87, %p88
      %p91 = scmp.ne.s32.totalorder %s76, %s90
      %p92 = scmp.eq.s32.totalorder %s19, 0
      %p93 = por %p91, %p92
      %s94 = ssub.s32 %s13, %s20
      %p95 = scmp.eq.s32.totalorder %s94, 0
      %s97 = sadd.s32 %s96, 1
      %s98 = scalar_select %p95, %s96, %s97
      %p101 = pneg %p95
      %p102 = scmp.eq.s32.totalorder %s13, 1
      %p103 = por %p101, %p102
      %p104 = scmp.ne.s32.totalorder %s96, %s99
      %p105 = scmp.eq.s32.totalorder %s13, 0
      %p106 = por %p104, %p105
      %p107 = scmp.ne.s32.totalorder %s96, %s99
      %p108 = scmp.eq.s32.totalorder %s18, 1
      %p109 = por %p107, %p108
      %p110 = scmp.ne.s32.totalorder %s99, %s100
      %p111 = scmp.eq.s32.totalorder %s18, 0
      %p112 = por %p110, %p111
      %p113 = scmp.ne.s32.totalorder %s99, %s100
      %p114 = scmp.eq.s32.totalorder %s19, 1
      %p115 = por %p113, %p114
      %p117 = scmp.ne.s32.totalorder %s100, %s116
      %p118 = scmp.eq.s32.totalorder %s19, 0
      %p119 = por %p117, %p118
      %s120 = ssub.s32 %s13, %s20
      %p121 = scmp.eq.s32.totalorder %s120, 0
      %s123 = sadd.s32 %s122, 1
      %s124 = scalar_select %p121, %s122, %s123
      %p127 = pneg %p121
      %p128 = scmp.eq.s32.totalorder %s13, 1
      %p129 = por %p127, %p128
      %p130 = scmp.ne.s32.totalorder %s122, %s125
      %p131 = scmp.eq.s32.totalorder %s13, 0
      %p132 = por %p130, %p131
      %p133 = scmp.ne.s32.totalorder %s122, %s125
      %p134 = scmp.eq.s32.totalorder %s18, 1
      %p135 = por %p133, %p134
      %p136 = scmp.ne.s32.totalorder %s125, %s126
      %p137 = scmp.eq.s32.totalorder %s18, 0
      %p138 = por %p136, %p137
      %p139 = scmp.ne.s32.totalorder %s125, %s126
      %p140 = scmp.eq.s32.totalorder %s19, 1
      %p141 = por %p139, %p140
      %p143 = scmp.ne.s32.totalorder %s126, %s142
      %p144 = scmp.eq.s32.totalorder %s19, 0
      %p145 = por %p143, %p144
      %p146 = scmp.le.s32.totalorder 1, %s13
      %p147 = scmp.lt.s32.totalorder %s13, 3
      %p148 = pnand %p146, %p147
      %p149 = pneg %p148
      // Predicated region
      $region9: #{tpu_custom_call.1} parent=5 // pred_check
        _
      $region10: #{tpu_custom_call.1} parent=5 // pred_check_branch
        %151 = sbr.rel (%p148) target = $region12
      $region11: #{tpu_custom_call.1} parent=5 // pred_region
        %s152 = ssub.s32 %s13, 1
        // Predicated region
        $region13: #{tpu_custom_call.1} parent=11 // pred_check
          %p153 = pneg %p86
        $region14: #{tpu_custom_call.1} parent=11 // pred_check_branch
          %155 = sbr.rel (%p153) target = $region16
        $region15: #{tpu_custom_call.1} parent=11 // pred_region
          _
        $region16: #{tpu_custom_call.1} parent=11 // pred_fallthru
          _
      $region12: #{tpu_custom_call.1} parent=5 // pred_fallthru
        _
      %p156 = scmp.lt.s32.totalorder %s13, 2
      // Predicated region
      $region17: #{tpu_custom_call.1} parent=5 // pred_check
        %p157 = pneg %p156
      $region18: #{tpu_custom_call.1} parent=5 // pred_check_branch
        %159 = sbr.rel (%p157) target = $region20
      $region19: #{tpu_custom_call.1} parent=5 // pred_region
        // Predicated region
        $region21: #{tpu_custom_call.1} parent=19 // pred_check
          %p160 = pneg %p33
        $region22: #{tpu_custom_call.1} parent=19 // pred_check_branch
          %162 = sbr.rel (%p160) target = $region24
        $region23: #{tpu_custom_call.1} parent=19 // pred_region
          %p163 = scmp.lt.s32.totalorder %s13, 1
          %s164 = scalar_select %p163, %s13, 1
          %s165 = smul.addr %s164, 8
          %s166 = smul.addr %s165, 8
          %s167 = scalar_lea.vmem %s0, %s166
        $region24: #{tpu_custom_call.1} parent=19 // pred_fallthru
          _
        // Predicated region
        $region25: #{tpu_custom_call.1} parent=19 // pred_check
          %p168 = pneg %p59
        $region26: #{tpu_custom_call.1} parent=19 // pred_check_branch
          %170 = sbr.rel (%p168) target = $region28
        $region27: #{tpu_custom_call.1} parent=19 // pred_region
          %p171 = scmp.lt.s32.totalorder %s13, 1
          %s172 = scalar_select %p171, %s13, 1
          %s173 = smul.addr %s172, 2
          %s174 = smul.addr %s173, 4
          %s175 = scalar_lea.vmem %s1, %s174
        $region28: #{tpu_custom_call.1} parent=19 // pred_fallthru
          _
        // Predicated region
        $region29: #{tpu_custom_call.1} parent=19 // pred_check
          %p176 = pneg %p106
        $region30: #{tpu_custom_call.1} parent=19 // pred_check_branch
          %178 = sbr.rel (%p176) target = $region32
        $region31: #{tpu_custom_call.1} parent=19 // pred_region
          %p179 = scmp.lt.s32.totalorder %s13, 1
          %s180 = scalar_select %p179, %s13, 1
          %s181 = smul.addr %s180, 8
          %s182 = scalar_lea.vmem %s3, %s181
        $region32: #{tpu_custom_call.1} parent=19 // pred_fallthru
          _
      $region20: #{tpu_custom_call.1} parent=5 // pred_fallthru
        _
      %p183 = scmp.le.s32.totalorder 1, %s13
      %p184 = scmp.lt.s32.totalorder %s13, 3
      %p185 = pnand %p183, %p184
      %p186 = pneg %p185
      // Predicated region
      $region33: #{tpu_custom_call.1} parent=5 // pred_check
        _
      $region34: #{tpu_custom_call.1} parent=5 // pred_check_branch
        %188 = sbr.rel (%p185) target = $region36
      $region35: #{tpu_custom_call.1} parent=5 // pred_region
        %s189 = ssub.s32 %s13, 1
        %p190 = scmp.lt.s32.totalorder %s18, 1
        %s191 = scalar_select %p190, %s18, 1
        %s192 = smul.addr %s191, 8
        %s193 = smul.addr %s192, 8
        %s194 = scalar_lea.vmem %s0, %s193
        %p195 = pneg %p39
        %p196 = pneg %p36
        %p197 = scmp.lt.s32.totalorder %s18, 1
        %s198 = scalar_select %p197, %s18, 1
        %s199 = smul.addr %s198, 2
        %s200 = smul.addr %s199, 4
        %s201 = scalar_lea.vmem %s1, %s200
        %p202 = pneg %p65
        %p203 = pneg %p62
        %p204 = pneg %p86
        %p205 = pneg %p83
        %p206 = scmp.lt.s32.totalorder %s18, 1
        %s207 = scalar_select %p206, %s18, 1
        %s208 = smul.addr %s207, 8
        %s209 = scalar_lea.vmem %s3, %s208
        %p210 = pneg %p112
        %p211 = pneg %p109
        %p212 = pneg %p138
        %p213 = pneg %p135
        %s214 = sand.u32 %s125, 1
        %s215 = scalar_lea.sflag [#allocation3], %s214
        %s216 = sand.u32 %s125, 1
        %s217 = smul.addr %s216, 48
        %s218 = scalar_lea.vmem [#allocation2], %s217
        %p219 = scmp.lt.s32.totalorder %s18, 1
        %s220 = scalar_select %p219, %s18, 1
        %s221 = smul.addr %s220, 8
        %s222 = smul.addr %s221, 8
        %s223 = scalar_lea.vmem %s0, %s222
        %p224 = scmp.lt.s32.totalorder %s18, 1
        %s225 = scalar_select %p224, %s18, 1
        %s226 = smul.addr %s225, 2
        %s227 = smul.addr %s226, 4
        %s228 = scalar_lea.vmem %s1, %s227
        %p229 = scmp.lt.s32.totalorder %s18, 1
        %s230 = scalar_select %p229, %s18, 1
        %s231 = smul.addr %s230, 8
        %s232 = scalar_lea.vmem %s3, %s231
        %v233 = vld [vmem:[%s223] sm:$0xff]
        %v234 = vld [vmem:[%s223 + $0x8] sm:$0xff]
        %v235 = vld [vmem:[%s223 + $0x10] sm:$0xff]
        %v236 = vld [vmem:[%s223 + $0x18] sm:$0xff]
        %v237 = vld [vmem:[%s223 + $0x20] sm:$0xff]
        %v238 = vld [vmem:[%s223 + $0x28] sm:$0xff]
        %v239 = vld [vmem:[%s223 + $0x30] sm:$0x7f]
        %v240 = vld [vmem:[%s223 + $0x38] sm:$0x7f]
        %v241 = vld [vmem:[%s228] sm:$0xff]
        %v242 = vld [vmem:[%s2] sm:$0xf]
        %v243 = vld [vmem:[%s232] sm:$0xff]
        %v244 = vcvt.f32.s32.to.zero.pseudo %v243
        %v245 = vlaneseq
        %v246 = vand.u32 %v245, 127
        %247 = vset.pattern.permute.xlu0 0
        %248 = vperm.xlu0 %247, %v244
        %v249 = vpop.permute.xlu0 %248
        %vm250 = vcmp.eq.s32.totalorder %v246, %v249
        %v251 = vsel %vm250, 1, 0
        %v252 = vcvt.s32.f32 %v251
        %vm253 = vcmask 252928
        %v255 = vsel %vm253, %v252, 0
        %vm257 = vcmask 1046528
        %v259 = vsel %vm257, %v239, 0
        %v262 = vsel %vm257, %v240, 0
        %264 = vmatpush.msra.mxu0 0.0
        %265 = vmatpush.msra.mxu0 0.0
        %266 = vmatpush.msra.mxu0 0.0
        %267 = vmatpush.msra.mxu0 0.0
        %268 = vmatpush.msra.mxu0 0.0
        %269 = vmatpush.msra.mxu0 0.0
        %270 = vmatpush.msra.mxu0 0.0
        %271 = vmatpush.msra.mxu0 0.0
        %272 = vmatpush.msra.mxu0 0.0
        %273 = vmatpush.msra.mxu0 0.0
        %274 = vmatpush.msra.mxu0 0.0
        %275 = vmatpush.msra.mxu0 0.0
        %276 = vmatpush.msra.mxu0 %v259
        %277 = vmatpush.msra.mxu0 %v237
        %278 = vmatpush.msra.mxu0 %v235
        %279 = vmatpush.msra.mxu0 %v233
        %280 = vmatmul.f32.gmra.mxu0 %v255
        %v281 = vpop.f32.mrf.mxu0
        %v282 = vadd.f32 0.0, %v281
        %283 = vdwg.mxu0
        %284 = vmatpush.msra.mxu0 0.0
        %285 = vmatpush.msra.mxu0 0.0
        %286 = vmatpush.msra.mxu0 0.0
        %287 = vmatpush.msra.mxu0 0.0
        %288 = vmatpush.msra.mxu0 0.0
        %289 = vmatpush.msra.mxu0 0.0
        %290 = vmatpush.msra.mxu0 0.0
        %291 = vmatpush.msra.mxu0 0.0
        %292 = vmatpush.msra.mxu0 0.0
        %293 = vmatpush.msra.mxu0 0.0
        %294 = vmatpush.msra.mxu0 0.0
        %295 = vmatpush.msra.mxu0 0.0
        %296 = vmatpush.msra.mxu0 %v262
        %297 = vmatpush.msra.mxu0 %v238
        %298 = vmatpush.msra.mxu0 %v236
        %299 = vmatpush.msra.mxu0 %v234
        %300 = vmatmul.f32.gmra.mxu0 %v255
        %v301 = vpop.f32.mrf.mxu0
        %v302 = vadd.f32 0.0, %v301
        %303 = vdwg.mxu0
        %305 = vset.pattern.permute.xlu0 9
        %306 = vperm.xlu0 %305, %v243
        %v307 = vpop.permute.xlu0 %306
        %v310 = vperm.slane %v241, 2
        %v311 = vperm.slane %v241, 6
        %v314 = vperm.slane %v310, 2
        %v315 = vperm.slane %v311, 2
        %v316 = vmin.f32 %v307, %v314
        %v317 = vmin.f32 %v307, %v315
        %318 = vset.pattern.permute.xlu0 7
        %319 = vperm.xlu0 %318, %v243
        %v320 = vpop.permute.xlu0 %319
        %v322 = vperm.slane %v241, 0
        %v323 = vperm.slane %v241, 4
        %v326 = vperm.slane %v322, 0
        %v327 = vperm.slane %v323, 0
        %v328 = vmax.f32 %v320, %v326
        %v329 = vmax.f32 %v320, %v327
        %v330 = vsub.f32 %v316, %v328
        %v331 = vsub.f32 %v317, %v329
        %v332 = vmax.f32 %v330, 0.0
        %v333 = vmax.f32 %v331, 0.0
        %334 = vset.pattern.permute.xlu0 10
        %335 = vperm.xlu0 %334, %v243
        %v336 = vpop.permute.xlu0 %335
        %v338 = vperm.slane %v241, 3
        %v339 = vperm.slane %v241, 7
        %v342 = vperm.slane %v338, 3
        %v343 = vperm.slane %v339, 3
        %v344 = vmin.f32 %v336, %v342
        %v345 = vmin.f32 %v336, %v343
        %346 = vset.pattern.permute.xlu0 8
        %347 = vperm.xlu0 %346, %v243
        %v348 = vpop.permute.xlu0 %347
        %v350 = vperm.slane %v241, 1
        %v351 = vperm.slane %v241, 5
        %v354 = vperm.slane %v350, 1
        %v355 = vperm.slane %v351, 1
        %v356 = vmax.f32 %v348, %v354
        %v357 = vmax.f32 %v348, %v355
        %v358 = vsub.f32 %v344, %v356
        %v359 = vsub.f32 %v345, %v357
        %v360 = vmax.f32 %v358, 0.0
        %v361 = vmax.f32 %v359, 0.0
        %v362 = vmul.f32 %v332, %v360
        %v363 = vmul.f32 %v333, %v361
        %364 = vrot.lane.b32.xlu0 %v243, 2
        %v365 = vpop.permute.xlu0 %364
        %v367 = vsub.f32 %v243, %v365
        %v368 = vmax.f32 %v367, 0.0
        %370 = vrot.lane.b32.xlu0 %v368, 127
        %v371 = vpop.permute.xlu0 %370
        %v373 = vmul.f32 %v368, %v371
        %v374 = vrot.slane %v241, 6
        %v376 = vsub.f32 %v241, %v374
        %v377 = vmax.f32 %v376, 0.0
        %v379 = vrot.slane %v377, 5
        %v380 = vrot.slane %v379, 4
        %v382 = vmul.f32 %v377, %v380
        %384 = vset.pattern.permute.xlu0 9
        %385 = vperm.xlu0 %384, %v373
        %v386 = vpop.permute.xlu0 %385
        %v389 = vperm.slane %v382, 2
        %v390 = vperm.slane %v382, 6
        %v393 = vperm.slane %v389, 2
        %v394 = vperm.slane %v390, 2
        %v395 = vadd.f32 %v386, %v393
        %v396 = vadd.f32 %v386, %v394
        %v397 = vsub.f32 %v395, %v362
        %v398 = vsub.f32 %v396, %v363
        %v399 = vadd.f32 %v397, 1e-09
        %v400 = vadd.f32 %v398, 1e-09
        %v401 = vrcp.pop %v399
        %v402 = vmul.f32 %v399, %v401
        %v403 = vsub.f32 1.0, %v402
        %v404 = vmul.f32 %v401, %v403
        %v405 = vadd.f32 %v401, %v404
        %vm406 = vweird.f32 %v399
        %vm407 = vweird.f32 %v401
        %vm408 = vmor %vm406, %vm407
        %v409 = vsel %vm408, %v401, %v405
        %v410 = vand.u32 2147483647, %v399
        %vm411 = vcmp.eq.f32.partialorder %v410, 8.507059e+37
        %v412 = vand.u32 %v399, 2147483648
        %v413 = vor.u32 1.1754944e-38, %v412
        %v414 = vsel %vm411, %v413, %v409
        %v415 = vmul.f32 %v362, %v414
        %v416 = vrcp.pop %v400
        %v417 = vmul.f32 %v400, %v416
        %v418 = vsub.f32 1.0, %v417
        %v419 = vmul.f32 %v416, %v418
        %v420 = vadd.f32 %v416, %v419
        %vm421 = vweird.f32 %v400
        %vm422 = vweird.f32 %v416
        %vm423 = vmor %vm421, %vm422
        %v424 = vsel %vm423, %v416, %v420
        %v425 = vand.u32 2147483647, %v400
        %vm426 = vcmp.eq.f32.partialorder %v425, 8.507059e+37
        %v427 = vand.u32 %v400, 2147483648
        %v428 = vor.u32 1.1754944e-38, %v427
        %v429 = vsel %vm426, %v428, %v424
        %v430 = vmul.f32 %v363, %v429
        %v431 = vmul.f32 %v415, %v415
        %v432 = vmul.f32 %v430, %v430
        %v433 = vmul.f32 %v431, %v431
        %v434 = vmul.f32 %v432, %v432
        %v435 = vmul.f32 %v431, %v433
        %v436 = vmul.f32 %v432, %v434
        %v437 = vmul.f32 %v282, %v435
        %v438 = vmul.f32 %v302, %v436
        %v440 = vperm.slane %v242, 0
        %v441 = vperm.slane %v242, 2
        %v444 = vperm.slane %v440, 0
        %v445 = vperm.slane %v441, 0
        %v446 = vsub.f32 %v444, %v320
        %v447 = vsub.f32 %v445, %v320
        %v448 = vperm.slane %v242, 1
        %v449 = vperm.slane %v242, 3
        %v452 = vperm.slane %v448, 1
        %v453 = vperm.slane %v449, 1
        %v454 = vsub.f32 %v452, %v348
        %v455 = vsub.f32 %v453, %v348
        %v456 = vmin.f32 %v446, %v454
        %v457 = vmin.f32 %v447, %v455
        %v458 = vsub.f32 %v307, %v444
        %v459 = vsub.f32 %v307, %v445
        %v460 = vsub.f32 %v336, %v452
        %v461 = vsub.f32 %v336, %v453
        %v462 = vmin.f32 %v458, %v460
        %v463 = vmin.f32 %v459, %v461
        %v464 = vmin.f32 %v456, %v462
        %v465 = vmin.f32 %v457, %v463
        %vm466 = vcmp.gt.f32.partialorder %v464, 1e-09
        %vm467 = vcmp.gt.f32.partialorder %v465, 1e-09
        %v468 = vsel %vm466, 1, 0
        %v469 = vsel %vm467, 1, 0
        %v470 = vcvt.s32.f32 %v468
        %v471 = vcvt.s32.f32 %v469
        %v472 = vmul.f32 %v437, %v470
        %v473 = vmul.f32 %v438, %v471
        %v474 = vadd.s32 %v246, 128
        %v475 = vmax.f32 %v472, %v473
        %476 = vmax.xlane.f32.xlu0 %v475
        %v477 = vpop.xlane.xlu0 %476
        %vm478 = vcmp.eq.f32.partialorder %v472, %v477
        %vm479 = vcmp.eq.f32.partialorder %v473, %v477
        %v480 = vsel %vm478, %v246, 256
        %v481 = vsel %vm479, %v474, 256
        %vm482 = vcmp.lt.s32.totalorder %v480, %v481
        %v483 = vsel %vm482, %v480, %v481
        %v484 = vand.u32 %v483, 65535
        %v485 = vshra.s32 %v483, 16
        %v486 = vcvt.s32.f32 %v484
        %v487 = vcvt.s32.f32 %v485
        %488 = vmin.xlane.f32.xlu0 %v487
        %v489 = vpop.xlane.xlu0 %488
        %vm490 = vcmp.eq.f32.partialorder %v487, %v489
        %v491 = vsel %vm490, %v486, inf
        %492 = vmin.xlane.f32.xlu0 %v491
        %v493 = vpop.xlane.xlu0 %492
        %v494 = vcvt.f32.s32 %v493
        %v495 = vcvt.f32.s32 %v489
        %v496 = vshll.u32 %v495, 16
        %v497 = vadd.s32 %v496, %v494
        %vm498 = vcmp.eq.s32.totalorder %v246, %v497
        %vm499 = vcmp.eq.s32.totalorder %v474, %v497
        %v500 = vsel %vm498, 1, 0
        %v501 = vsel %vm499, 1, 0
        %v502 = vcvt.s32.f32 %v500
        %v503 = vcvt.s32.f32 %v501
        %v504 = vadd.f32 %v502, 0.0
        %v505 = vadd.f32 %v503, 0.0
        %v506 = vsel %vm498, -1e+30, %v472
        %v507 = vsel %vm499, -1e+30, %v473
        %v508 = vmax.f32 %v506, %v507
        %509 = vmax.xlane.f32.xlu0 %v508
        %v510 = vpop.xlane.xlu0 %509
        %vm511 = vcmp.eq.f32.partialorder %v506, %v510
        %vm512 = vcmp.eq.f32.partialorder %v507, %v510
        %v513 = vsel %vm511, %v246, 256
        %v514 = vsel %vm512, %v474, 256
        %vm515 = vcmp.lt.s32.totalorder %v513, %v514
        %v516 = vsel %vm515, %v513, %v514
        %v517 = vand.u32 %v516, 65535
        %v518 = vshra.s32 %v516, 16
        %v519 = vcvt.s32.f32 %v517
        %v520 = vcvt.s32.f32 %v518
        %521 = vmin.xlane.f32.xlu0 %v520
        %v522 = vpop.xlane.xlu0 %521
        %vm523 = vcmp.eq.f32.partialorder %v520, %v522
        %v524 = vsel %vm523, %v519, inf
        %525 = vmin.xlane.f32.xlu0 %v524
        %v526 = vpop.xlane.xlu0 %525
        %v527 = vcvt.f32.s32 %v526
        %v528 = vcvt.f32.s32 %v522
        %v529 = vshll.u32 %v528, 16
        %v530 = vadd.s32 %v529, %v527
        %vm531 = vcmp.eq.s32.totalorder %v246, %v530
        %vm532 = vcmp.eq.s32.totalorder %v474, %v530
        %v533 = vsel %vm531, 1, 0
        %v534 = vsel %vm532, 1, 0
        %v535 = vcvt.s32.f32 %v533
        %v536 = vcvt.s32.f32 %v534
        %v537 = vadd.f32 %v504, %v535
        %v538 = vadd.f32 %v505, %v536
        %v539 = vsel %vm531, -1e+30, %v506
        %v540 = vsel %vm532, -1e+30, %v507
        %v541 = vmax.f32 %v539, %v540
        %542 = vmax.xlane.f32.xlu0 %v541
        %v543 = vpop.xlane.xlu0 %542
        %vm544 = vcmp.eq.f32.partialorder %v539, %v543
        %vm545 = vcmp.eq.f32.partialorder %v540, %v543
        %v546 = vsel %vm544, %v246, 256
        %v547 = vsel %vm545, %v474, 256
        %vm548 = vcmp.lt.s32.totalorder %v546, %v547
        %v549 = vsel %vm548, %v546, %v547
        %v550 = vand.u32 %v549, 65535
        %v551 = vshra.s32 %v549, 16
        %v552 = vcvt.s32.f32 %v550
        %v553 = vcvt.s32.f32 %v551
        %554 = vmin.xlane.f32.xlu0 %v553
        %v555 = vpop.xlane.xlu0 %554
        %vm556 = vcmp.eq.f32.partialorder %v553, %v555
        %v557 = vsel %vm556, %v552, inf
        %558 = vmin.xlane.f32.xlu0 %v557
        %v559 = vpop.xlane.xlu0 %558
        %v560 = vcvt.f32.s32 %v559
        %v561 = vcvt.f32.s32 %v555
        %v562 = vshll.u32 %v561, 16
        %v563 = vadd.s32 %v562, %v560
        %vm564 = vcmp.eq.s32.totalorder %v246, %v563
        %vm565 = vcmp.eq.s32.totalorder %v474, %v563
        %v566 = vsel %vm564, 1, 0
        %v567 = vsel %vm565, 1, 0
        %v568 = vcvt.s32.f32 %v566
        %v569 = vcvt.s32.f32 %v567
        %v570 = vadd.f32 %v537, %v568
        %v571 = vadd.f32 %v538, %v569
        %v572 = vsel %vm564, -1e+30, %v539
        %v573 = vsel %vm565, -1e+30, %v540
        %v574 = vmax.f32 %v572, %v573
        %575 = vmax.xlane.f32.xlu0 %v574
        %v576 = vpop.xlane.xlu0 %575
        %vm577 = vcmp.eq.f32.partialorder %v572, %v576
        %vm578 = vcmp.eq.f32.partialorder %v573, %v576
        %v579 = vsel %vm577, %v246, 256
        %v580 = vsel %vm578, %v474, 256
        %vm581 = vcmp.lt.s32.totalorder %v579, %v580
        %v582 = vsel %vm581, %v579, %v580
        %v583 = vand.u32 %v582, 65535
        %v584 = vshra.s32 %v582, 16
        %v585 = vcvt.s32.f32 %v583
        %v586 = vcvt.s32.f32 %v584
        %587 = vmin.xlane.f32.xlu0 %v586
        %v588 = vpop.xlane.xlu0 %587
        %vm589 = vcmp.eq.f32.partialorder %v586, %v588
        %v590 = vsel %vm589, %v585, inf
        %591 = vmin.xlane.f32.xlu0 %v590
        %v592 = vpop.xlane.xlu0 %591
        %v593 = vcvt.f32.s32 %v592
        %v594 = vcvt.f32.s32 %v588
        %v595 = vshll.u32 %v594, 16
        %v596 = vadd.s32 %v595, %v593
        %vm597 = vcmp.eq.s32.totalorder %v246, %v596
        %vm598 = vcmp.eq.s32.totalorder %v474, %v596
        %v599 = vsel %vm597, 1, 0
        %v600 = vsel %vm598, 1, 0
        %v601 = vcvt.s32.f32 %v599
        %v602 = vcvt.s32.f32 %v600
        %v603 = vadd.f32 %v570, %v601
        %v604 = vadd.f32 %v571, %v602
        %v605 = vsel %vm597, -1e+30, %v572
        %v606 = vsel %vm598, -1e+30, %v573
        %v607 = vmax.f32 %v605, %v606
        %608 = vmax.xlane.f32.xlu0 %v607
        %v609 = vpop.xlane.xlu0 %608
        %vm610 = vcmp.eq.f32.partialorder %v605, %v609
        %vm611 = vcmp.eq.f32.partialorder %v606, %v609
        %v612 = vsel %vm610, %v246, 256
        %v613 = vsel %vm611, %v474, 256
        %vm614 = vcmp.lt.s32.totalorder %v612, %v613
        %v615 = vsel %vm614, %v612, %v613
        %v616 = vand.u32 %v615, 65535
        %v617 = vshra.s32 %v615, 16
        %v618 = vcvt.s32.f32 %v616
        %v619 = vcvt.s32.f32 %v617
        %620 = vmin.xlane.f32.xlu0 %v619
        %v621 = vpop.xlane.xlu0 %620
        %vm622 = vcmp.eq.f32.partialorder %v619, %v621
        %v623 = vsel %vm622, %v618, inf
        %624 = vmin.xlane.f32.xlu0 %v623
        %v625 = vpop.xlane.xlu0 %624
        %v626 = vcvt.f32.s32 %v625
        %v627 = vcvt.f32.s32 %v621
        %v628 = vshll.u32 %v627, 16
        %v629 = vadd.s32 %v628, %v626
        %vm630 = vcmp.eq.s32.totalorder %v246, %v629
        %vm631 = vcmp.eq.s32.totalorder %v474, %v629
        %v632 = vsel %vm630, 1, 0
        %v633 = vsel %vm631, 1, 0
        %v634 = vcvt.s32.f32 %v632
        %v635 = vcvt.s32.f32 %v633
        %v636 = vadd.f32 %v603, %v634
        %v637 = vadd.f32 %v604, %v635
        %v638 = vsel %vm630, -1e+30, %v605
        %v639 = vsel %vm631, -1e+30, %v606
        %v640 = vmax.f32 %v638, %v639
        %641 = vmax.xlane.f32.xlu0 %v640
        %v642 = vpop.xlane.xlu0 %641
        %vm643 = vcmp.eq.f32.partialorder %v638, %v642
        %vm644 = vcmp.eq.f32.partialorder %v639, %v642
        %v645 = vsel %vm643, %v246, 256
        %v646 = vsel %vm644, %v474, 256
        %vm647 = vcmp.lt.s32.totalorder %v645, %v646
        %v648 = vsel %vm647, %v645, %v646
        %v649 = vand.u32 %v648, 65535
        %v650 = vshra.s32 %v648, 16
        %v651 = vcvt.s32.f32 %v649
        %v652 = vcvt.s32.f32 %v650
        %653 = vmin.xlane.f32.xlu0 %v652
        %v654 = vpop.xlane.xlu0 %653
        %vm655 = vcmp.eq.f32.partialorder %v652, %v654
        %v656 = vsel %vm655, %v651, inf
        %657 = vmin.xlane.f32.xlu0 %v656
        %v658 = vpop.xlane.xlu0 %657
        %v659 = vcvt.f32.s32 %v658
        %v660 = vcvt.f32.s32 %v654
        %v661 = vshll.u32 %v660, 16
        %v662 = vadd.s32 %v661, %v659
        %vm663 = vcmp.eq.s32.totalorder %v246, %v662
        %vm664 = vcmp.eq.s32.totalorder %v474, %v662
        %v665 = vsel %vm663, 1, 0
        %v666 = vsel %vm664, 1, 0
        %v667 = vcvt.s32.f32 %v665
        %v668 = vcvt.s32.f32 %v666
        %v669 = vadd.f32 %v636, %v667
        %v670 = vadd.f32 %v637, %v668
        %v671 = vsel %vm663, -1e+30, %v638
        %v672 = vsel %vm664, -1e+30, %v639
        %v673 = vmax.f32 %v671, %v672
        %674 = vmax.xlane.f32.xlu0 %v673
        %v675 = vpop.xlane.xlu0 %674
        %vm676 = vcmp.eq.f32.partialorder %v671, %v675
        %vm677 = vcmp.eq.f32.partialorder %v672, %v675
        %v678 = vsel %vm676, %v246, 256
        %v679 = vsel %vm677, %v474, 256
        %vm680 = vcmp.lt.s32.totalorder %v678, %v679
        %v681 = vsel %vm680, %v678, %v679
        %v682 = vand.u32 %v681, 65535
        %v683 = vshra.s32 %v681, 16
        %v684 = vcvt.s32.f32 %v682
        %v685 = vcvt.s32.f32 %v683
        %686 = vmin.xlane.f32.xlu0 %v685
        %v687 = vpop.xlane.xlu0 %686
        %vm688 = vcmp.eq.f32.partialorder %v685, %v687
        %v689 = vsel %vm688, %v684, inf
        %690 = vmin.xlane.f32.xlu0 %v689
        %v691 = vpop.xlane.xlu0 %690
        %v692 = vcvt.f32.s32 %v691
        %v693 = vcvt.f32.s32 %v687
        %v694 = vshll.u32 %v693, 16
        %v695 = vadd.s32 %v694, %v692
        %vm696 = vcmp.eq.s32.totalorder %v246, %v695
        %vm697 = vcmp.eq.s32.totalorder %v474, %v695
        %v698 = vsel %vm696, 1, 0
        %v699 = vsel %vm697, 1, 0
        %v700 = vcvt.s32.f32 %v698
        %v701 = vcvt.s32.f32 %v699
        %v702 = vadd.f32 %v669, %v700
        %v703 = vadd.f32 %v670, %v701
        %v704 = vsel %vm696, -1e+30, %v671
        %v705 = vsel %vm697, -1e+30, %v672
        %v706 = vmax.f32 %v704, %v705
        %707 = vmax.xlane.f32.xlu0 %v706
        %v708 = vpop.xlane.xlu0 %707
        %vm709 = vcmp.eq.f32.partialorder %v704, %v708
        %vm710 = vcmp.eq.f32.partialorder %v705, %v708
        %v711 = vsel %vm709, %v246, 256
        %v712 = vsel %vm710, %v474, 256
        %vm713 = vcmp.lt.s32.totalorder %v711, %v712
        %v714 = vsel %vm713, %v711, %v712
        %v715 = vand.u32 %v714, 65535
        %v716 = vshra.s32 %v714, 16
        %v717 = vcvt.s32.f32 %v715
        %v718 = vcvt.s32.f32 %v716
        %719 = vmin.xlane.f32.xlu0 %v718
        %v720 = vpop.xlane.xlu0 %719
        %vm721 = vcmp.eq.f32.partialorder %v718, %v720
        %v722 = vsel %vm721, %v717, inf
        %723 = vmin.xlane.f32.xlu0 %v722
        %v724 = vpop.xlane.xlu0 %723
        %v725 = vcvt.f32.s32 %v724
        %v726 = vcvt.f32.s32 %v720
        %v727 = vshll.u32 %v726, 16
        %v728 = vadd.s32 %v727, %v725
        %vm729 = vcmp.eq.s32.totalorder %v246, %v728
        %vm730 = vcmp.eq.s32.totalorder %v474, %v728
        %v731 = vsel %vm729, 1, 0
        %v732 = vsel %vm730, 1, 0
        %v733 = vcvt.s32.f32 %v731
        %v734 = vcvt.s32.f32 %v732
        %v735 = vadd.f32 %v702, %v733
        %v736 = vadd.f32 %v703, %v734
        %v737 = vsel %vm729, -1e+30, %v704
        %v738 = vsel %vm730, -1e+30, %v705
        %v739 = vmax.f32 %v737, %v738
        %740 = vmax.xlane.f32.xlu0 %v739
        %v741 = vpop.xlane.xlu0 %740
        %vm742 = vcmp.eq.f32.partialorder %v737, %v741
        %vm743 = vcmp.eq.f32.partialorder %v738, %v741
        %v744 = vsel %vm742, %v246, 256
        %v745 = vsel %vm743, %v474, 256
        %vm746 = vcmp.lt.s32.totalorder %v744, %v745
        %v747 = vsel %vm746, %v744, %v745
        %v748 = vand.u32 %v747, 65535
        %v749 = vshra.s32 %v747, 16
        %v750 = vcvt.s32.f32 %v748
        %v751 = vcvt.s32.f32 %v749
        %752 = vmin.xlane.f32.xlu0 %v751
        %v753 = vpop.xlane.xlu0 %752
        %vm754 = vcmp.eq.f32.partialorder %v751, %v753
        %v755 = vsel %vm754, %v750, inf
        %756 = vmin.xlane.f32.xlu0 %v755
        %v757 = vpop.xlane.xlu0 %756
        %v758 = vcvt.f32.s32 %v757
        %v759 = vcvt.f32.s32 %v753
        %v760 = vshll.u32 %v759, 16
        %v761 = vadd.s32 %v760, %v758
        %vm762 = vcmp.eq.s32.totalorder %v246, %v761
        %vm763 = vcmp.eq.s32.totalorder %v474, %v761
        %v764 = vsel %vm762, 1, 0
        %v765 = vsel %vm763, 1, 0
        %v766 = vcvt.s32.f32 %v764
        %v767 = vcvt.s32.f32 %v765
        %v768 = vadd.f32 %v735, %v766
        %v769 = vadd.f32 %v736, %v767
        %v770 = vsel %vm762, -1e+30, %v737
        %v771 = vsel %vm763, -1e+30, %v738
        %v772 = vmax.f32 %v770, %v771
        %773 = vmax.xlane.f32.xlu0 %v772
        %v774 = vpop.xlane.xlu0 %773
        %vm775 = vcmp.eq.f32.partialorder %v770, %v774
        %vm776 = vcmp.eq.f32.partialorder %v771, %v774
        %v777 = vsel %vm775, %v246, 256
        %v778 = vsel %vm776, %v474, 256
        %vm779 = vcmp.lt.s32.totalorder %v777, %v778
        %v780 = vsel %vm779, %v777, %v778
        %v781 = vand.u32 %v780, 65535
        %v782 = vshra.s32 %v780, 16
        %v783 = vcvt.s32.f32 %v781
        %v784 = vcvt.s32.f32 %v782
        %785 = vmin.xlane.f32.xlu0 %v784
        %v786 = vpop.xlane.xlu0 %785
        %vm787 = vcmp.eq.f32.partialorder %v784, %v786
        %v788 = vsel %vm787, %v783, inf
        %789 = vmin.xlane.f32.xlu0 %v788
        %v790 = vpop.xlane.xlu0 %789
        %v791 = vcvt.f32.s32 %v790
        %v792 = vcvt.f32.s32 %v786
        %v793 = vshll.u32 %v792, 16
        %v794 = vadd.s32 %v793, %v791
        %vm795 = vcmp.eq.s32.totalorder %v246, %v794
        %vm796 = vcmp.eq.s32.totalorder %v474, %v794
        %v797 = vsel %vm795, 1, 0
        %v798 = vsel %vm796, 1, 0
        %v799 = vcvt.s32.f32 %v797
        %v800 = vcvt.s32.f32 %v798
        %v801 = vadd.f32 %v768, %v799
        %v802 = vadd.f32 %v769, %v800
        %v803 = vsel %vm795, -1e+30, %v770
        %v804 = vsel %vm796, -1e+30, %v771
        %v805 = vmax.f32 %v803, %v804
        %806 = vmax.xlane.f32.xlu0 %v805
        %v807 = vpop.xlane.xlu0 %806
        %vm808 = vcmp.eq.f32.partialorder %v803, %v807
        %vm809 = vcmp.eq.f32.partialorder %v804, %v807
        %v810 = vsel %vm808, %v246, 256
        %v811 = vsel %vm809, %v474, 256
        %vm812 = vcmp.lt.s32.totalorder %v810, %v811
        %v813 = vsel %vm812, %v810, %v811
        %v814 = vand.u32 %v813, 65535
        %v815 = vshra.s32 %v813, 16
        %v816 = vcvt.s32.f32 %v814
        %v817 = vcvt.s32.f32 %v815
        %818 = vmin.xlane.f32.xlu0 %v817
        %v819 = vpop.xlane.xlu0 %818
        %vm820 = vcmp.eq.f32.partialorder %v817, %v819
        %v821 = vsel %vm820, %v816, inf
        %822 = vmin.xlane.f32.xlu0 %v821
        %v823 = vpop.xlane.xlu0 %822
        %v824 = vcvt.f32.s32 %v823
        %v825 = vcvt.f32.s32 %v819
        %v826 = vshll.u32 %v825, 16
        %v827 = vadd.s32 %v826, %v824
        %vm828 = vcmp.eq.s32.totalorder %v246, %v827
        %vm829 = vcmp.eq.s32.totalorder %v474, %v827
        %v830 = vsel %vm828, 1, 0
        %v831 = vsel %vm829, 1, 0
        %v832 = vcvt.s32.f32 %v830
        %v833 = vcvt.s32.f32 %v831
        %v834 = vadd.f32 %v801, %v832
        %v835 = vadd.f32 %v802, %v833
        %v836 = vsel %vm828, -1e+30, %v803
        %v837 = vsel %vm829, -1e+30, %v804
        %v838 = vmax.f32 %v836, %v837
        %839 = vmax.xlane.f32.xlu0 %v838
        %v840 = vpop.xlane.xlu0 %839
        %vm841 = vcmp.eq.f32.partialorder %v836, %v840
        %vm842 = vcmp.eq.f32.partialorder %v837, %v840
        %v843 = vsel %vm841, %v246, 256
        %v844 = vsel %vm842, %v474, 256
        %vm845 = vcmp.lt.s32.totalorder %v843, %v844
        %v846 = vsel %vm845, %v843, %v844
        %v847 = vand.u32 %v846, 65535
        %v848 = vshra.s32 %v846, 16
        %v849 = vcvt.s32.f32 %v847
        %v850 = vcvt.s32.f32 %v848
        %851 = vmin.xlane.f32.xlu0 %v850
        %v852 = vpop.xlane.xlu0 %851
        %vm853 = vcmp.eq.f32.partialorder %v850, %v852
        %v854 = vsel %vm853, %v849, inf
        %855 = vmin.xlane.f32.xlu0 %v854
        %v856 = vpop.xlane.xlu0 %855
        %v857 = vcvt.f32.s32 %v856
        %v858 = vcvt.f32.s32 %v852
        %v859 = vshll.u32 %v858, 16
        %v860 = vadd.s32 %v859, %v857
        %vm861 = vcmp.eq.s32.totalorder %v246, %v860
        %vm862 = vcmp.eq.s32.totalorder %v474, %v860
        %v863 = vsel %vm861, 1, 0
        %v864 = vsel %vm862, 1, 0
        %v865 = vcvt.s32.f32 %v863
        %v866 = vcvt.s32.f32 %v864
        %v867 = vadd.f32 %v834, %v865
        %v868 = vadd.f32 %v835, %v866
        %v869 = vsel %vm861, -1e+30, %v836
        %v870 = vsel %vm862, -1e+30, %v837
        %v871 = vmax.f32 %v869, %v870
        %872 = vmax.xlane.f32.xlu0 %v871
        %v873 = vpop.xlane.xlu0 %872
        %vm874 = vcmp.eq.f32.partialorder %v869, %v873
        %vm875 = vcmp.eq.f32.partialorder %v870, %v873
        %v876 = vsel %vm874, %v246, 256
        %v877 = vsel %vm875, %v474, 256
        %vm878 = vcmp.lt.s32.totalorder %v876, %v877
        %v879 = vsel %vm878, %v876, %v877
        %v880 = vand.u32 %v879, 65535
        %v881 = vshra.s32 %v879, 16
        %v882 = vcvt.s32.f32 %v880
        %v883 = vcvt.s32.f32 %v881
        %884 = vmin.xlane.f32.xlu0 %v883
        %v885 = vpop.xlane.xlu0 %884
        %vm886 = vcmp.eq.f32.partialorder %v883, %v885
        %v887 = vsel %vm886, %v882, inf
        %888 = vmin.xlane.f32.xlu0 %v887
        %v889 = vpop.xlane.xlu0 %888
        %v890 = vcvt.f32.s32 %v889
        %v891 = vcvt.f32.s32 %v885
        %v892 = vshll.u32 %v891, 16
        %v893 = vadd.s32 %v892, %v890
        %vm894 = vcmp.eq.s32.totalorder %v246, %v893
        %vm895 = vcmp.eq.s32.totalorder %v474, %v893
        %v896 = vsel %vm894, 1, 0
        %v897 = vsel %vm895, 1, 0
        %v898 = vcvt.s32.f32 %v896
        %v899 = vcvt.s32.f32 %v897
        %v900 = vadd.f32 %v867, %v898
        %v901 = vadd.f32 %v868, %v899
        %902 = vset.pattern.permute.xlu0 19
        %903 = vperm.xlu0 %902, %v243
        %v904 = vpop.permute.xlu0 %903
        %v906 = vmul.f32 %v900, %v904
        %v907 = vmul.f32 %v901, %v904
        %v908 = vmul.f32 %v906, %v470
        %v909 = vmul.f32 %v907, %v471
        %v910 = vlaneseq
        %v911 = vshrl.u32 %v910, 7
        %v912 = vrot.slane %v908, 4
        %v913 = vadd.f32 %v908, %v912
        %v914 = vrot.slane %v913, 2
        %v915 = vadd.f32 %v913, %v914
        %v916 = vrot.slane %v915, 1
        %v917 = vadd.f32 %v915, %v916
        %v918 = vrot.slane %v909, 4
        %v919 = vadd.f32 %v909, %v918
        %v920 = vrot.slane %v919, 2
        %v921 = vadd.f32 %v919, %v920
        %v922 = vrot.slane %v921, 1
        %v923 = vadd.f32 %v921, %v922
        %v924 = vrot.slane %v415, 4
        %v925 = vmax.f32 %v415, %v924
        %v926 = vrot.slane %v925, 2
        %v927 = vmax.f32 %v925, %v926
        %v928 = vrot.slane %v927, 1
        %v929 = vmax.f32 %v927, %v928
        %v930 = vrot.slane %v430, 4
        %v931 = vmax.f32 %v430, %v930
        %v932 = vrot.slane %v931, 2
        %v933 = vmax.f32 %v931, %v932
        %v934 = vrot.slane %v933, 1
        %v935 = vmax.f32 %v933, %v934
        %vm936 = vcmp.eq.f32.partialorder %v415, %v929
        %vm937 = vcmp.eq.f32.partialorder %v430, %v935
        %v938 = vsel %vm936, %v911, 8
        %v939 = vsel %vm937, %v911, 8
        %v940 = vrot.slane %v938, 4
        %vm941 = vcmp.lt.s32.totalorder %v938, %v940
        %v942 = vsel %vm941, %v938, %v940
        %v943 = vrot.slane %v942, 2
        %vm944 = vcmp.lt.s32.totalorder %v942, %v943
        %v945 = vsel %vm944, %v942, %v943
        %v946 = vrot.slane %v945, 1
        %vm947 = vcmp.lt.s32.totalorder %v945, %v946
        %v948 = vsel %vm947, %v945, %v946
        %v949 = vrot.slane %v939, 4
        %vm950 = vcmp.lt.s32.totalorder %v939, %v949
        %v951 = vsel %vm950, %v939, %v949
        %v952 = vrot.slane %v951, 2
        %vm953 = vcmp.lt.s32.totalorder %v951, %v952
        %v954 = vsel %vm953, %v951, %v952
        %v955 = vrot.slane %v954, 1
        %vm956 = vcmp.lt.s32.totalorder %v954, %v955
        %v957 = vsel %vm956, %v954, %v955
        %vm958 = vcmp.gt.f32.partialorder %v917, 1.0
        %vm959 = vcmp.gt.f32.partialorder %v923, 1.0
        %vm960 = vcmp.eq.s32.totalorder %v911, %v948
        %vm961 = vcmp.eq.s32.totalorder %v911, %v957
        %v962 = vsel %vm960, 1, 0
        %v963 = vsel %vm961, 1, 0
        %v964 = vcvt.s32.f32 %v962
        %v965 = vcvt.s32.f32 %v963
        %v966 = vsel %vm958, 1, 0
        %v967 = vsel %vm959, 1, 0
        %vm968 = vcmp.eq.s32.totalorder %v966, 1
        %vm969 = vcmp.eq.s32.totalorder %v967, 1
        %v970 = vsel %vm968, %v964, %v908
        %v971 = vsel %vm969, %v965, %v909
        %v972 = vrot.slane %v970, 4
        %v973 = vadd.f32 %v970, %v972
        %v974 = vrot.slane %v973, 2
        %v975 = vadd.f32 %v973, %v974
        %v976 = vrot.slane %v975, 1
        %v977 = vadd.f32 %v975, %v976
        %v978 = vrot.slane %v971, 4
        %v979 = vadd.f32 %v971, %v978
        %v980 = vrot.slane %v979, 2
        %v981 = vadd.f32 %v979, %v980
        %v982 = vrot.slane %v981, 1
        %v983 = vadd.f32 %v981, %v982
        %v984 = vrot.slane %v970, 4
        %v985 = vmax.f32 %v970, %v984
        %v986 = vrot.slane %v985, 2
        %v987 = vmax.f32 %v985, %v986
        %v988 = vrot.slane %v987, 1
        %v989 = vmax.f32 %v987, %v988
        %v990 = vrot.slane %v971, 4
        %v991 = vmax.f32 %v971, %v990
        %v992 = vrot.slane %v991, 2
        %v993 = vmax.f32 %v991, %v992
        %v994 = vrot.slane %v993, 1
        %v995 = vmax.f32 %v993, %v994
        %vm996 = vcmp.eq.f32.partialorder %v970, %v989
        %vm997 = vcmp.eq.f32.partialorder %v971, %v995
        %v998 = vsel %vm996, %v911, 8
        %v999 = vsel %vm997, %v911, 8
        %v1000 = vrot.slane %v998, 4
        %vm1001 = vcmp.lt.s32.totalorder %v998, %v1000
        %v1002 = vsel %vm1001, %v998, %v1000
        %v1003 = vrot.slane %v1002, 2
        %vm1004 = vcmp.lt.s32.totalorder %v1002, %v1003
        %v1005 = vsel %vm1004, %v1002, %v1003
        %v1006 = vrot.slane %v1005, 1
        %vm1007 = vcmp.lt.s32.totalorder %v1005, %v1006
        %v1008 = vsel %vm1007, %v1005, %v1006
        %v1009 = vrot.slane %v999, 4
        %vm1010 = vcmp.lt.s32.totalorder %v999, %v1009
        %v1011 = vsel %vm1010, %v999, %v1009
        %v1012 = vrot.slane %v1011, 2
        %vm1013 = vcmp.lt.s32.totalorder %v1011, %v1012
        %v1014 = vsel %vm1013, %v1011, %v1012
        %v1015 = vrot.slane %v1014, 1
        %vm1016 = vcmp.lt.s32.totalorder %v1014, %v1015
        %v1017 = vsel %vm1016, %v1014, %v1015
        %vm1018 = vcmp.eq.s32.totalorder %v911, %v1008
        %vm1019 = vcmp.eq.s32.totalorder %v911, %v1017
        %v1020 = vsel %vm1018, 1, 0
        %v1021 = vsel %vm1019, 1, 0
        %v1022 = vcvt.s32.f32 %v1020
        %v1023 = vcvt.s32.f32 %v1021
        %1024 = vxpose.xlu0.b32.start [1/16] %v243, 128
        %1025 = vxpose.xlu0.b32.cont [2/16] 0.0, 128
        %1026 = vxpose.xlu0.b32.cont [3/16] 0.0, 128
        %1027 = vxpose.xlu0.b32.cont [4/16] 0.0, 128
        %1028 = vxpose.xlu0.b32.cont [5/16] 0.0, 128
        %1029 = vxpose.xlu0.b32.cont [6/16] 0.0, 128
        %1030 = vxpose.xlu0.b32.cont [7/16] 0.0, 128
        %1031 = vxpose.xlu0.b32.cont [8/16] 0.0, 128
        %1032 = vxpose.xlu0.b32.cont [9/16] 0.0, 128
        %1033 = vxpose.xlu0.b32.cont [10/16] 0.0, 128
        %1034 = vxpose.xlu0.b32.cont [11/16] 0.0, 128
        %1035 = vxpose.xlu0.b32.cont [12/16] 0.0, 128
        %1036 = vxpose.xlu0.b32.cont [13/16] 0.0, 128
        %1037 = vxpose.xlu0.b32.cont [14/16] 0.0, 128
        %1038 = vxpose.xlu0.b32.cont [15/16] 0.0, 128
        %1039 = vxpose.xlu0.b32.end [16/16] 0.0, 128
        %v1040 = vpop.trf.xlu0
        %v1041 = vpop.trf.xlu0
        %v1042 = vpop.trf.xlu0
        %v1043 = vpop.trf.xlu0
        %v1044 = vpop.trf.xlu0
        %v1045 = vpop.trf.xlu0
        %v1046 = vpop.trf.xlu0
        %v1047 = vpop.trf.xlu0
        %v1048 = vpop.trf.xlu0
        %v1049 = vpop.trf.xlu0
        %v1050 = vpop.trf.xlu0
        %v1051 = vpop.trf.xlu0
        %v1052 = vpop.trf.xlu0
        %v1053 = vpop.trf.xlu0
        %v1054 = vpop.trf.xlu0
        %v1055 = vpop.trf.xlu0
        %vm1056 = vcmask 64512
        %v1058 = vsel %vm1056, %v1040, 0
        %v1061 = vsel %vm1056, %v1041, 0
        %v1064 = vsel %vm1056, %v1042, 0
        %1066 = vmatpush.msra.mxu0 0.0
        %1067 = vmatpush.msra.mxu0 0.0
        %1068 = vmatpush.msra.mxu0 0.0
        %1069 = vmatpush.msra.mxu0 0.0
        %1070 = vmatpush.msra.mxu0 0.0
        %1071 = vmatpush.msra.mxu0 0.0
        %1072 = vmatpush.msra.mxu0 0.0
        %1073 = vmatpush.msra.mxu0 0.0
        %1074 = vmatpush.msra.mxu0 0.0
        %1075 = vmatpush.msra.mxu0 0.0
        %1076 = vmatpush.msra.mxu0 0.0
        %1077 = vmatpush.msra.mxu0 0.0
        %1078 = vmatpush.msra.mxu0 0.0
        %1079 = vmatpush.msra.mxu0 0.0
        %1080 = vmatpush.msra.mxu0 0.0
        %1081 = vmatpush.msra.mxu0 %v1022
        %1082 = vmatmul.f32.gmra.mxu0 %v1058
        %v1083 = vpop.f32.mrf.mxu0
        %v1084 = vadd.f32 0.0, %v1083
        %1085 = vmatmul.f32.gmra.mxu0 %v1061
        %v1086 = vpop.f32.mrf.mxu0
        %v1087 = vadd.f32 0.0, %v1086
        %1088 = vmatmul.f32.gmra.mxu0 %v1064
        %v1089 = vpop.f32.mrf.mxu0
        %v1090 = vadd.f32 0.0, %v1089
        %1091 = vdwg.mxu0
        %1092 = vmatpush.msra.mxu0 0.0
        %1093 = vmatpush.msra.mxu0 0.0
        %1094 = vmatpush.msra.mxu0 0.0
        %1095 = vmatpush.msra.mxu0 0.0
        %1096 = vmatpush.msra.mxu0 0.0
        %1097 = vmatpush.msra.mxu0 0.0
        %1098 = vmatpush.msra.mxu0 0.0
        %1099 = vmatpush.msra.mxu0 0.0
        %1100 = vmatpush.msra.mxu0 0.0
        %1101 = vmatpush.msra.mxu0 0.0
        %1102 = vmatpush.msra.mxu0 0.0
        %1103 = vmatpush.msra.mxu0 0.0
        %1104 = vmatpush.msra.mxu0 0.0
        %1105 = vmatpush.msra.mxu0 0.0
        %1106 = vmatpush.msra.mxu0 0.0
        %1107 = vmatpush.msra.mxu0 %v1023
        %1108 = vmatmul.f32.gmra.mxu0 %v1058
        %v1109 = vpop.f32.mrf.mxu0
        %v1110 = vadd.f32 0.0, %v1109
        %1111 = vmatmul.f32.gmra.mxu0 %v1061
        %v1112 = vpop.f32.mrf.mxu0
        %v1113 = vadd.f32 0.0, %v1112
        %1114 = vmatmul.f32.gmra.mxu0 %v1064
        %v1115 = vpop.f32.mrf.mxu0
        %v1116 = vadd.f32 0.0, %v1115
        %1117 = vdwg.mxu0
        %v1118 = vmul.f32 %v437, %v970
        %v1119 = vmul.f32 %v438, %v971
        %v1120 = vmax.f32 %v1118, %v1119
        %1121 = vmax.xlane.f32.xlu0 %v1120
        %v1122 = vpop.xlane.xlu0 %1121
        %v1123 = vmul.f32 %v415, %v970
        %v1124 = vmul.f32 %v430, %v971
        %v1125 = vmax.f32 %v1123, %v1124
        %1126 = vmax.xlane.f32.xlu0 %v1125
        %v1127 = vpop.xlane.xlu0 %1126
        %v1128 = vmul.f32 %v1118, %v1127
        %v1129 = vmul.f32 %v1119, %v1127
        %v1130 = vadd.f32 %v1122, 1e-09
        %v1131 = vrcp.pop %v1130
        %v1132 = vmul.f32 %v1130, %v1131
        %v1133 = vsub.f32 1.0, %v1132
        %v1134 = vmul.f32 %v1131, %v1133
        %v1135 = vadd.f32 %v1131, %v1134
        %vm1136 = vweird.f32 %v1130
        %vm1137 = vweird.f32 %v1131
        %vm1138 = vmor %vm1136, %vm1137
        %v1139 = vsel %vm1138, %v1131, %v1135
        %v1140 = vand.u32 2147483647, %v1130
        %vm1141 = vcmp.eq.f32.partialorder %v1140, 8.507059e+37
        %v1142 = vand.u32 %v1130, 2147483648
        %v1143 = vor.u32 1.1754944e-38, %v1142
        %v1144 = vsel %vm1141, %v1143, %v1139
        %v1145 = vmul.f32 %v1128, %v1144
        %v1146 = vmul.f32 %v1129, %v1144
        %v1147 = vrot.slane %v1145, 4
        %v1148 = vmax.f32 %v1145, %v1147
        %v1149 = vrot.slane %v1148, 2
        %v1150 = vmax.f32 %v1148, %v1149
        %v1151 = vrot.slane %v1150, 1
        %v1152 = vmax.f32 %v1150, %v1151
        %v1153 = vrot.slane %v1146, 4
        %v1154 = vmax.f32 %v1146, %v1153
        %v1155 = vrot.slane %v1154, 2
        %v1156 = vmax.f32 %v1154, %v1155
        %v1157 = vrot.slane %v1156, 1
        %v1158 = vmax.f32 %v1156, %v1157
        %v1159 = vadd.s32 %v911, 8
        %v1160 = vadd.s32 %v911, 16
        %v1161 = vcvt.f32.s32.to.zero.pseudo %v1084
        %v1162 = vcvt.f32.s32.to.zero.pseudo %v1110
        %v1163 = vcvt.f32.s32.to.zero.pseudo %v1087
        %v1164 = vcvt.f32.s32.to.zero.pseudo %v1113
        %v1165 = vcvt.f32.s32.to.zero.pseudo %v1090
        %v1166 = vcvt.f32.s32.to.zero.pseudo %v1116
        %vm1167 = vcmp.gt.s32.totalorder %v1161, 0
        %v1168 = vsel %vm1167, %v1161, 0
        %vm1169 = vcmp.gt.s32.totalorder %v1162, 0
        %v1170 = vsel %vm1169, %v1162, 0
        %vm1171 = vcmp.gt.s32.totalorder %v1163, 0
        %v1172 = vsel %vm1171, %v1163, 0
        %vm1173 = vcmp.gt.s32.totalorder %v1164, 0
        %v1174 = vsel %vm1173, %v1164, 0
        %vm1175 = vcmp.gt.s32.totalorder %v1165, 0
        %v1176 = vsel %vm1175, %v1165, 0
        %vm1177 = vcmp.gt.s32.totalorder %v1166, 0
        %v1178 = vsel %vm1177, %v1166, 0
        %v1179 = vcvt.s32.f32 %v1168
        %v1180 = vcvt.s32.f32 %v1170
        %v1181 = vcvt.s32.f32 %v1172
        %v1182 = vcvt.s32.f32 %v1174
        %v1183 = vcvt.s32.f32 %v1176
        %v1184 = vcvt.s32.f32 %v1178
        %vm1185 = vcmp.lt.s32.totalorder %v911, 7
        %vm1186 = vcmp.lt.s32.totalorder %v1159, 7
        %vm1187 = vcmp.lt.s32.totalorder %v1160, 7
        %v1188 = vsel %vm1185, 1, 0
        %v1189 = vsel %vm1186, 1, 0
        %v1190 = vsel %vm1187, 1, 0
        %vm1191 = vcmp.eq.s32.totalorder %v1188, 1
        %vm1192 = vcmp.eq.s32.totalorder %v1189, 1
        %vm1193 = vcmp.eq.s32.totalorder %v1190, 1
        %v1194 = vsel %vm1191, %v1179, %v1084
        %v1195 = vsel %vm1191, %v1180, %v1110
        %v1196 = vsel %vm1192, %v1181, %v1087
        %v1197 = vsel %vm1192, %v1182, %v1113
        %v1198 = vsel %vm1193, %v1183, %v1090
        %v1199 = vsel %vm1193, %v1184, %v1116
        %vm1200 = vcmp.eq.s32.totalorder %v911, 19
        %vm1201 = vcmp.eq.s32.totalorder %v1159, 19
        %vm1202 = vcmp.eq.s32.totalorder %v1160, 19
        %v1203 = vsel %vm1200, 1, 0
        %v1204 = vsel %vm1201, 1, 0
        %v1205 = vsel %vm1202, 1, 0
        %vm1206 = vcmp.eq.s32.totalorder %v1203, 1
        %vm1207 = vcmp.eq.s32.totalorder %v1204, 1
        %vm1208 = vcmp.eq.s32.totalorder %v1205, 1
        %v1209 = vsel %vm1206, %v977, %v1194
        %v1210 = vsel %vm1206, %v983, %v1195
        %v1211 = vsel %vm1207, %v977, %v1196
        %v1212 = vsel %vm1207, %v983, %v1197
        %v1213 = vsel %vm1208, %v977, %v1198
        %v1214 = vsel %vm1208, %v983, %v1199
        %vm1215 = vcmp.eq.s32.totalorder %v911, 20
        %vm1216 = vcmp.eq.s32.totalorder %v1159, 20
        %vm1217 = vcmp.eq.s32.totalorder %v1160, 20
        %v1218 = vsel %vm1215, 1, 0
        %v1219 = vsel %vm1216, 1, 0
        %v1220 = vsel %vm1217, 1, 0
        %vm1221 = vcmp.eq.s32.totalorder %v1218, 1
        %vm1222 = vcmp.eq.s32.totalorder %v1219, 1
        %vm1223 = vcmp.eq.s32.totalorder %v1220, 1
        %v1224 = vsel %vm1221, %v1152, %v1209
        %v1225 = vsel %vm1221, %v1158, %v1210
        %v1226 = vsel %vm1222, %v1152, %v1211
        %v1227 = vsel %vm1222, %v1158, %v1212
        %v1228 = vsel %vm1223, %v1152, %v1213
        %v1229 = vsel %vm1223, %v1158, %v1214
        %1230 = vst [vmem:[%s218] sm:$0xff] %v1224
        %1231 = vst [vmem:[%s218 + $0x8] sm:$0xff] %v1225
        %1232 = vst [vmem:[%s218 + $0x10] sm:$0xff] %v1226
        %1233 = vst [vmem:[%s218 + $0x18] sm:$0xff] %v1227
        %1234 = vst [vmem:[%s218 + $0x20] sm:$0xff] %v1228
        %1235 = vst [vmem:[%s218 + $0x28] sm:$0xff] %v1229
        %s1236 = sand.u32 %s125, 1
        %s1237 = scalar_lea.sflag [#allocation3], %s1236
        %s1238 = sand.u32 %s125, 1
        %s1239 = smul.addr %s1238, 48
        %s1240 = scalar_lea.vmem [#allocation2], %s1239
        // Predicated region
        $region37: #{tpu_custom_call.1} parent=35 // pred_check
          %p1241 = pneg %p135
        $region38: #{tpu_custom_call.1} parent=35 // pred_check_branch
          %1243 = sbr.rel (%p1241) target = $region40
        $region39: #{tpu_custom_call.1} parent=35 // pred_region
          %1245 = vsyncadd %s1237, 0
          %s1246 = smul.addr %s18, 6
          %s1247 = smul.addr %s1246, 8
          %s1248 = scalar_lea.hbm %s4, %s1247
          %s1249 = sshll.u32 %s1240, 4
          %s1250 = int_to_ptr.vmem [resolvable:$true] %s1249
          %s1251 = sshll.u32 %s1248, 4
          %s1252 = int_to_ptr.hbm [resolvable:$true] %s1251
          %1257 = dma.vmem_to_hbm [thread:$0]  %s1250, 768, %s1252, %s1237, 256, 256, 16
        $region40: #{tpu_custom_call.1} parent=35 // pred_fallthru
          _
      $region36: #{tpu_custom_call.1} parent=5 // pred_fallthru
        _
      %p1258 = scmp.le.s32.totalorder 2, %s13
      // Predicated region
      $region41: #{tpu_custom_call.1} parent=5 // pred_check
        %p1259 = pneg %p1258
      $region42: #{tpu_custom_call.1} parent=5 // pred_check_branch
        %1261 = sbr.rel (%p1259) target = $region44
      $region43: #{tpu_custom_call.1} parent=5 // pred_region
        %s1262 = ssub.s32 %s13, 2
        // Predicated region
        $region45: #{tpu_custom_call.1} parent=43 // pred_check
          %p1263 = pneg %p141
        $region46: #{tpu_custom_call.1} parent=43 // pred_check_branch
          %1265 = sbr.rel (%p1263) target = $region48
        $region47: #{tpu_custom_call.1} parent=43 // pred_region
          %s1266 = sand.u32 %s126, 1
          %s1267 = scalar_lea.sflag [#allocation3], %s1266
          %s1268 = sand.u32 %s126, 1
          %s1269 = smul.addr %s1268, 48
          %s1270 = scalar_lea.vmem [#allocation2], %s1269
          %1272 = dma.done %s1267, 768
        $region48: #{tpu_custom_call.1} parent=43 // pred_fallthru
          _
      $region44: #{tpu_custom_call.1} parent=5 // pred_fallthru
        _
    $region6: #{tpu_custom_call.1} parent=1 // loop_footer
      %s17 = sadd.s32 1, %s13
    $region7: #{tpu_custom_call.1} parent=1 // loop_footer_branch
      %12 = sbr.rel target = $region3
    $region8: #{tpu_custom_call.1} parent=1 // loop_exit
      _
    %1273 = vsyncpa [#allocation3], 1
    %s1274 = scalar_lea.sflag [#allocation3], 1
    %1275 = vsyncpa %s1274, 1

</llo_original>
